<compile_context>
chip_gen: v7x
topology: tpu7x:2x2x1
jax: 0.10.0
libtpu: 0.0.40
codegen_flags: <defaults>
</compile_context>

<pallas_src>
import functools

import numpy as np
import jax
import jax.numpy as jnp
from jax import lax
from jax.experimental import pallas as pl
from jax.experimental.pallas import tpu as pltpu

_TC_MAX = 256   # time steps per grid chunk (multiple of 8)
_UNROLL = 8     # inner-loop unroll cap


def _make_kernel(H, Tc, T_rem, unroll):
    G = 4 * H

    def kernel(x_ref, w4_ref, wi_ref, b4_ref, wfc_ref, bfc_ref, out_ref, h_ref, c_ref):
        # x_ref:   (Tc, B)   time-major input chunk, batch on lanes
        # w4_ref:  (4H, H)   W_hh rows permuted to [i,f,o,g]; i/f/o rows pre-scaled by 0.5
        # wi_ref:  (4H, 1)   W_ih (input_size == 1), same permutation/scaling
        # b4_ref:  (4H, 1)   b_ih + b_hh, same permutation/scaling
        # wfc_ref: (O, H)    FC weight
        # bfc_ref: (O, 1)    FC bias
        # out_ref: (O, B)    FC output, transposed (wrapper transposes back)
        # h_ref/c_ref: (H, B) VMEM scratch carry across grid chunks
        chunk = pl.program_id(0)
        last = pl.num_programs(0) - 1
        B = x_ref.shape[1]

        @pl.when(chunk == 0)
        def _init():
            h_ref[...] = jnp.zeros_like(h_ref)
            c_ref[...] = jnp.zeros_like(c_ref)

        w4 = w4_ref[...]
        # Hoisted, loop-invariant lane-broadcasts (not re-emitted per step).
        wi_b = jnp.broadcast_to(wi_ref[...], (G, B))
        b_b = jnp.broadcast_to(b4_ref[...], (G, B))

        def run(nsteps):
            def step(t, carry):
                h, c = carry                                    # (H, B) each
                x_row = x_ref[pl.ds(t, 1), :]                   # (1, B), batch on lanes
                # Recurrent matmul + input projection + bias; only this chain is serial.
                gates = (jnp.dot(w4, h, preferred_element_type=jnp.float32)
                         + x_row * wi_b + b_b)                  # (4H, B)
                t_all = jnp.tanh(gates)                         # ONE full-width EUP push
                sig = 0.5 * t_all[0:3 * H, :] + 0.5             # sigmoid for i, f, o
                i_g = sig[0:H, :]
                f_g = sig[H:2 * H, :]
                o_g = sig[2 * H:3 * H, :]
                g_g = t_all[3 * H:4 * H, :]
                c_new = f_g * c + i_g * g_g
                h_new = o_g * jnp.tanh(c_new)
                return h_new, c_new

            h_n, c_n = lax.fori_loop(0, nsteps, step, (h_ref[...], c_ref[...]),
                                     unroll=max(1, min(nsteps, unroll)))
            h_ref[...] = h_n
            c_ref[...] = c_n

        if T_rem == Tc:
            run(Tc)
        else:
            @pl.when(chunk != last)
            def _full_chunk():
                run(Tc)

            @pl.when(chunk == last)
            def _tail_chunk():
                run(T_rem)

        @pl.when(chunk == last)
        def _fc():
            # out^T = W_fc @ h_last + b_fc  (standard-orientation matmul, no transpose
            # on the recurrence path; wrapper flips the tiny (O, B) result).
            out_ref[...] = (jnp.dot(wfc_ref[...], h_ref[...],
                                    preferred_element_type=jnp.float32)
                            + bfc_ref[...])

    return kernel


def prepare_params(params):
    """One-time weight preprocessing (hoisted out of the per-call wrapper).

    PyTorch gate order [i, f, g, o] -> [i, f, o, g]; the 0.5 sigmoid pre-scale is
    folded into the i/f/o rows so the kernel uses a single full-width tanh.
    """
    w_ih, b_ih, w_hh, b_hh, w_fc, b_fc = params
    H = w_hh.shape[1]
    perm = np.concatenate([np.arange(0, H), np.arange(H, 2 * H),
                           np.arange(3 * H, 4 * H), np.arange(2 * H, 3 * H)])
    scale = np.ones((4 * H, 1), np.float32)
    scale[:3 * H] = 0.5                                   # i, f, o rows (post-permutation)
    scale = jnp.asarray(scale)

    w4 = jnp.asarray(w_hh, jnp.float32)[perm, :] * scale                        # (4H, H)
    wi = jnp.asarray(w_ih, jnp.float32)[perm, :] * scale                        # (4H, 1)
    b4 = (jnp.asarray(b_ih + b_hh, jnp.float32)[perm])[:, None] * scale         # (4H, 1)
    wfc = jnp.asarray(w_fc, jnp.float32)                                        # (O, H)
    bfc = jnp.asarray(b_fc, jnp.float32)[:, None]                               # (O, 1)
    return (w4, wi, b4, wfc, bfc)


@jax.jit
def rnn_forward(x, prep):
    """x: (B, T, 1) float32 -> (B, output_len) float32 (PyTorch module semantics)."""
    w4, wi, b4, wfc, bfc = prep
    B, T, _ = x.shape
    H = w4.shape[1]
    O = wfc.shape[0]

    # Compact time-major input: (T, B), batch on lanes. No xwb slab in HBM.
    x_tm = jnp.transpose(x[:, :, 0], (1, 0)).astype(jnp.float32)

    if T <= _TC_MAX:
        Tc, nchunks = T, 1
    else:
        Tc = _TC_MAX
        nchunks = (T + Tc - 1) // Tc
    T_rem = T - (nchunks - 1) * Tc

    kernel = _make_kernel(H, Tc, T_rem, _UNROLL)

    out_t = pl.pallas_call(
        kernel,
        out_shape=jax.ShapeDtypeStruct((O, B), jnp.float32),
        grid=(nchunks,),
        in_specs=[
            pl.BlockSpec((Tc, B), lambda c: (c, 0)),          # x chunk (double-buffered)
            pl.BlockSpec((4 * H, H), lambda c: (0, 0)),       # W_hh (resident)
            pl.BlockSpec((4 * H, 1), lambda c: (0, 0)),       # W_ih
            pl.BlockSpec((4 * H, 1), lambda c: (0, 0)),       # bias
            pl.BlockSpec((O, H), lambda c: (0, 0)),           # W_fc
            pl.BlockSpec((O, 1), lambda c: (0, 0)),           # b_fc
        ],
        out_specs=pl.BlockSpec((O, B), lambda c: (0, 0)),
        scratch_shapes=[pltpu.VMEM((H, B), jnp.float32),      # h carry
                        pltpu.VMEM((H, B), jnp.float32)],     # c carry
        compiler_params=pltpu.CompilerParams(
            dimension_semantics=("arbitrary",)),
    )(x_tm, w4, wi, b4, wfc, bfc)

    return out_t.T                                            # (B, O)


def init_params(key, hidden_unit, output_len):
    """Deterministic init matching PyTorch parameter shapes (uniform +-1/sqrt(H))."""
    H = hidden_unit
    ks = jax.random.split(key, 6)
    bound = 1.0 / np.sqrt(H)
    u = lambda k, shape: jax.random.uniform(k, shape, jnp.float32, -bound, bound)
    w_ih = u(ks[0], (4 * H, 1))
    b_ih = u(ks[1], (4 * H,))
    w_hh = u(ks[2], (4 * H, H))
    b_hh = u(ks[3], (4 * H,))
    w_fc = u(ks[4], (output_len, H))
    b_fc = u(ks[5], (output_len,))
    return (w_ih, b_ih, w_hh, b_hh, w_fc, b_fc)


def rnn_forward_ref(x, params):
    """Pure-JAX reference (PyTorch LSTM semantics) for correctness check."""
    w_ih, b_ih, w_hh, b_hh, w_fc, b_fc = params
    B, T, _ = x.shape
    H = w_hh.shape[1]
    h = jnp.zeros((B, H), jnp.float32)
    c = jnp.zeros((B, H), jnp.float32)
    for t in range(T):
        gates = x[:, t, :] @ w_ih.T + b_ih + h @ w_hh.T + b_hh
        i = jax.nn.sigmoid(gates[:, 0:H])
        f = jax.nn.sigmoid(gates[:, H:2 * H])
        g = jnp.tanh(gates[:, 2 * H:3 * H])
        o = jax.nn.sigmoid(gates[:, 3 * H:4 * H])
        c = f * c + i * g
        h = o * jnp.tanh(c)
    return h @ w_fc.T + b_fc


if __name__ == "__main__":
    B, T, H, OUT = 4, 8, 32, 5
    key = jax.random.PRNGKey(0)
    kx, kp = jax.random.split(key)
    x = jax.random.normal(kx, (B, T, 1), dtype=jnp.float32)
    params = init_params(kp, hidden_unit=H, output_len=OUT)

    prep = prepare_params(params)          # one-time weight prep (hoisted per review)
    out = rnn_forward(x, prep)
    out = jax.block_until_ready(out)

    ref = rnn_forward_ref(x, params)
    assert out.shape == (B, OUT)
    np.testing.assert_allclose(np.asarray(out), np.asarray(ref), rtol=1e-5, atol=2e-5)

    print("KERNEL_OK")
</pallas_src>

<mosaic_0001>
module attributes {stable_mosaic.version = 11 : i64} {
  func.func @kernel(%arg0: i32, %arg1: memref<8x4xf32, #tpu.memory_space<vmem>>, %arg2: memref<128x32xf32, #tpu.memory_space<vmem>>, %arg3: memref<128x1xf32, #tpu.memory_space<vmem>>, %arg4: memref<128x1xf32, #tpu.memory_space<vmem>>, %arg5: memref<5x32xf32, #tpu.memory_space<vmem>>, %arg6: memref<5x1xf32, #tpu.memory_space<vmem>>, %arg7: memref<5x4xf32, #tpu.memory_space<vmem>>, %arg8: memref<32x4xf32, #tpu.memory_space<vmem>>, %arg9: memref<32x4xf32, #tpu.memory_space<vmem>>) attributes {dimension_semantics = [#tpu.dimension_semantics<arbitrary>], iteration_bounds = array<i64: 1>, scalar_prefetch = 0 : i64, scratch_operands = 2 : i64, tpu.core_type = #tpu.core_type<tc>, window_params = [{transform_indices = @transform_0, window_bounds = array<i64: 8, 4>}, {pipeline_mode = #tpu.pipeline_mode<synchronous>, transform_indices = @transform_1, window_bounds = array<i64: 128, 32>}, {pipeline_mode = #tpu.pipeline_mode<synchronous>, transform_indices = @transform_2, window_bounds = array<i64: 128, 1>}, {pipeline_mode = #tpu.pipeline_mode<synchronous>, transform_indices = @transform_3, window_bounds = array<i64: 128, 1>}, {pipeline_mode = #tpu.pipeline_mode<synchronous>, transform_indices = @transform_4, window_bounds = array<i64: 5, 32>}, {pipeline_mode = #tpu.pipeline_mode<synchronous>, transform_indices = @transform_5, window_bounds = array<i64: 5, 1>}, {pipeline_mode = #tpu.pipeline_mode<synchronous>, transform_indices = @transform_6, window_bounds = array<i64: 5, 4>}]} {
    %c0_i32 = arith.constant 0 : i32
    %0 = arith.cmpi eq, %arg0, %c0_i32 : i32
    %1 = arith.extui %0 : i1 to i32
    %c0_i32_0 = arith.constant 0 : i32
    %2 = arith.cmpi ne, %1, %c0_i32_0 : i32
    scf.if %2 {
      %cst_48 = arith.constant 0.000000e+00 : f32
      %193 = vector.broadcast %cst_48 : f32 to vector<32x4xf32>
      %c0_49 = arith.constant 0 : index
      %c0_50 = arith.constant 0 : index
      %194 = vector.load %arg8[%c0_49, %c0_50] : memref<32x4xf32, #tpu.memory_space<vmem>>, vector<32x4xf32>
      tpu.vector_store %arg8[%c0_49, %c0_50], %193 {strides = array<i32>} : memref<32x4xf32, #tpu.memory_space<vmem>>, vector<32x4xf32>,
      %cst_51 = arith.constant 0.000000e+00 : f32
      %195 = vector.broadcast %cst_51 : f32 to vector<32x4xf32>
      %c0_52 = arith.constant 0 : index
      %c0_53 = arith.constant 0 : index
      %196 = vector.load %arg9[%c0_52, %c0_53] : memref<32x4xf32, #tpu.memory_space<vmem>>, vector<32x4xf32>
      tpu.vector_store %arg9[%c0_52, %c0_53], %195 {strides = array<i32>} : memref<32x4xf32, #tpu.memory_space<vmem>>, vector<32x4xf32>,
    } else {
    }
    %c0 = arith.constant 0 : index
    %c0_1 = arith.constant 0 : index
    %3 = vector.load %arg2[%c0, %c0_1] : memref<128x32xf32, #tpu.memory_space<vmem>>, vector<128x32xf32>
    %c0_2 = arith.constant 0 : index
    %c0_3 = arith.constant 0 : index
    %4 = vector.load %arg3[%c0_2, %c0_3] : memref<128x1xf32, #tpu.memory_space<vmem>>, vector<128x1xf32>
    %5 = vector.shape_cast %4 : vector<128x1xf32> to vector<128x1xf32>
    %6 = vector.broadcast %5 : vector<128x1xf32> to vector<128x4xf32>
    %c0_4 = arith.constant 0 : index
    %c0_5 = arith.constant 0 : index
    %7 = vector.load %arg4[%c0_4, %c0_5] : memref<128x1xf32, #tpu.memory_space<vmem>>, vector<128x1xf32>
    %8 = vector.shape_cast %7 : vector<128x1xf32> to vector<128x1xf32>
    %9 = vector.broadcast %8 : vector<128x1xf32> to vector<128x4xf32>
    %c0_6 = arith.constant 0 : index
    %c0_7 = arith.constant 0 : index
    %10 = vector.load %arg8[%c0_6, %c0_7] : memref<32x4xf32, #tpu.memory_space<vmem>>, vector<32x4xf32>
    %c0_8 = arith.constant 0 : index
    %c0_9 = arith.constant 0 : index
    %11 = vector.load %arg9[%c0_8, %c0_9] : memref<32x4xf32, #tpu.memory_space<vmem>>, vector<32x4xf32>
    %c0_i32_10 = arith.constant 0 : i32
    %12 = arith.index_cast %c0_i32_10 : i32 to index
    %c0_11 = arith.constant 0 : index
    %13 = vector.load %arg1[%12, %c0_11] : memref<8x4xf32, #tpu.memory_space<vmem>>, vector<1x4xf32>
    %cst = arith.constant dense<0.000000e+00> : vector<128x4xf32>
    %14 = tpu.matmul %3, %10, %cst {dimension_numbers = #tpu.dot_dimension_numbers<[1], [0], [0], [1], [0, 0, 1, 1], [], []>} : vector<128x32xf32>, vector<32x4xf32>, vector<128x4xf32> -> vector<128x4xf32>
    %15 = vector.broadcast %13 : vector<1x4xf32> to vector<128x4xf32>
    %16 = arith.mulf %15, %6 : vector<128x4xf32>
    %17 = arith.addf %14, %16 : vector<128x4xf32>
    %18 = arith.addf %17, %9 : vector<128x4xf32>
    %19 = math.tanh %18 : vector<128x4xf32>
    %20 = vector.extract_strided_slice %19 {offsets = [0, 0], sizes = [96, 4], strides = [1, 1]} : vector<128x4xf32> to vector<96x4xf32>
    %cst_12 = arith.constant 5.000000e-01 : f32
    %21 = vector.broadcast %cst_12 : f32 to vector<96x4xf32>
    %22 = arith.mulf %21, %20 : vector<96x4xf32>
    %cst_13 = arith.constant 5.000000e-01 : f32
    %23 = vector.broadcast %cst_13 : f32 to vector<96x4xf32>
    %24 = arith.addf %22, %23 : vector<96x4xf32>
    %25 = vector.extract_strided_slice %24 {offsets = [0, 0], sizes = [32, 4], strides = [1, 1]} : vector<96x4xf32> to vector<32x4xf32>
    %26 = vector.extract_strided_slice %24 {offsets = [32, 0], sizes = [32, 4], strides = [1, 1]} : vector<96x4xf32> to vector<32x4xf32>
    %27 = vector.extract_strided_slice %24 {offsets = [64, 0], sizes = [32, 4], strides = [1, 1]} : vector<96x4xf32> to vector<32x4xf32>
    %28 = vector.extract_strided_slice %19 {offsets = [96, 0], sizes = [32, 4], strides = [1, 1]} : vector<128x4xf32> to vector<32x4xf32>
    %29 = arith.mulf %26, %11 : vector<32x4xf32>
    %30 = arith.mulf %25, %28 : vector<32x4xf32>
    %31 = arith.addf %29, %30 : vector<32x4xf32>
    %32 = math.tanh %31 : vector<32x4xf32>
    %33 = arith.mulf %27, %32 : vector<32x4xf32>
    %c1_i32 = arith.constant 1 : i32
    %34 = arith.index_cast %c1_i32 : i32 to index
    %c0_14 = arith.constant 0 : index
    %35 = vector.load %arg1[%34, %c0_14] : memref<8x4xf32, #tpu.memory_space<vmem>>, vector<1x4xf32>
    %cst_15 = arith.constant dense<0.000000e+00> : vector<128x4xf32>
    %36 = tpu.matmul %3, %33, %cst_15 {dimension_numbers = #tpu.dot_dimension_numbers<[1], [0], [0], [1], [0, 0, 1, 1], [], []>} : vector<128x32xf32>, vector<32x4xf32>, vector<128x4xf32> -> vector<128x4xf32>
    %37 = vector.broadcast %35 : vector<1x4xf32> to vector<128x4xf32>
    %38 = arith.mulf %37, %6 : vector<128x4xf32>
    %39 = arith.addf %36, %38 : vector<128x4xf32>
    %40 = arith.addf %39, %9 : vector<128x4xf32>
    %41 = math.tanh %40 : vector<128x4xf32>
    %42 = vector.extract_strided_slice %41 {offsets = [0, 0], sizes = [96, 4], strides = [1, 1]} : vector<128x4xf32> to vector<96x4xf32>
    %cst_16 = arith.constant 5.000000e-01 : f32
    %43 = vector.broadcast %cst_16 : f32 to vector<96x4xf32>
    %44 = arith.mulf %43, %42 : vector<96x4xf32>
    %cst_17 = arith.constant 5.000000e-01 : f32
    %45 = vector.broadcast %cst_17 : f32 to vector<96x4xf32>
    %46 = arith.addf %44, %45 : vector<96x4xf32>
    %47 = vector.extract_strided_slice %46 {offsets = [0, 0], sizes = [32, 4], strides = [1, 1]} : vector<96x4xf32> to vector<32x4xf32>
    %48 = vector.extract_strided_slice %46 {offsets = [32, 0], sizes = [32, 4], strides = [1, 1]} : vector<96x4xf32> to vector<32x4xf32>
    %49 = vector.extract_strided_slice %46 {offsets = [64, 0], sizes = [32, 4], strides = [1, 1]} : vector<96x4xf32> to vector<32x4xf32>
    %50 = vector.extract_strided_slice %41 {offsets = [96, 0], sizes = [32, 4], strides = [1, 1]} : vector<128x4xf32> to vector<32x4xf32>
    %51 = arith.mulf %48, %31 : vector<32x4xf32>
    %52 = arith.mulf %47, %50 : vector<32x4xf32>
    %53 = arith.addf %51, %52 : vector<32x4xf32>
    %54 = math.tanh %53 : vector<32x4xf32>
    %55 = arith.mulf %49, %54 : vector<32x4xf32>
    %c2_i32 = arith.constant 2 : i32
    %56 = arith.index_cast %c2_i32 : i32 to index
    %c0_18 = arith.constant 0 : index
    %57 = vector.load %arg1[%56, %c0_18] : memref<8x4xf32, #tpu.memory_space<vmem>>, vector<1x4xf32>
    %cst_19 = arith.constant dense<0.000000e+00> : vector<128x4xf32>
    %58 = tpu.matmul %3, %55, %cst_19 {dimension_numbers = #tpu.dot_dimension_numbers<[1], [0], [0], [1], [0, 0, 1, 1], [], []>} : vector<128x32xf32>, vector<32x4xf32>, vector<128x4xf32> -> vector<128x4xf32>
    %59 = vector.broadcast %57 : vector<1x4xf32> to vector<128x4xf32>
    %60 = arith.mulf %59, %6 : vector<128x4xf32>
    %61 = arith.addf %58, %60 : vector<128x4xf32>
    %62 = arith.addf %61, %9 : vector<128x4xf32>
    %63 = math.tanh %62 : vector<128x4xf32>
    %64 = vector.extract_strided_slice %63 {offsets = [0, 0], sizes = [96, 4], strides = [1, 1]} : vector<128x4xf32> to vector<96x4xf32>
    %cst_20 = arith.constant 5.000000e-01 : f32
    %65 = vector.broadcast %cst_20 : f32 to vector<96x4xf32>
    %66 = arith.mulf %65, %64 : vector<96x4xf32>
    %cst_21 = arith.constant 5.000000e-01 : f32
    %67 = vector.broadcast %cst_21 : f32 to vector<96x4xf32>
    %68 = arith.addf %66, %67 : vector<96x4xf32>
    %69 = vector.extract_strided_slice %68 {offsets = [0, 0], sizes = [32, 4], strides = [1, 1]} : vector<96x4xf32> to vector<32x4xf32>
    %70 = vector.extract_strided_slice %68 {offsets = [32, 0], sizes = [32, 4], strides = [1, 1]} : vector<96x4xf32> to vector<32x4xf32>
    %71 = vector.extract_strided_slice %68 {offsets = [64, 0], sizes = [32, 4], strides = [1, 1]} : vector<96x4xf32> to vector<32x4xf32>
    %72 = vector.extract_strided_slice %63 {offsets = [96, 0], sizes = [32, 4], strides = [1, 1]} : vector<128x4xf32> to vector<32x4xf32>
    %73 = arith.mulf %70, %53 : vector<32x4xf32>
    %74 = arith.mulf %69, %72 : vector<32x4xf32>
    %75 = arith.addf %73, %74 : vector<32x4xf32>
    %76 = math.tanh %75 : vector<32x4xf32>
    %77 = arith.mulf %71, %76 : vector<32x4xf32>
    %c3_i32 = arith.constant 3 : i32
    %78 = arith.index_cast %c3_i32 : i32 to index
    %c0_22 = arith.constant 0 : index
    %79 = vector.load %arg1[%78, %c0_22] : memref<8x4xf32, #tpu.memory_space<vmem>>, vector<1x4xf32>
    %cst_23 = arith.constant dense<0.000000e+00> : vector<128x4xf32>
    %80 = tpu.matmul %3, %77, %cst_23 {dimension_numbers = #tpu.dot_dimension_numbers<[1], [0], [0], [1], [0, 0, 1, 1], [], []>} : vector<128x32xf32>, vector<32x4xf32>, vector<128x4xf32> -> vector<128x4xf32>
    %81 = vector.broadcast %79 : vector<1x4xf32> to vector<128x4xf32>
    %82 = arith.mulf %81, %6 : vector<128x4xf32>
    %83 = arith.addf %80, %82 : vector<128x4xf32>
    %84 = arith.addf %83, %9 : vector<128x4xf32>
    %85 = math.tanh %84 : vector<128x4xf32>
    %86 = vector.extract_strided_slice %85 {offsets = [0, 0], sizes = [96, 4], strides = [1, 1]} : vector<128x4xf32> to vector<96x4xf32>
    %cst_24 = arith.constant 5.000000e-01 : f32
    %87 = vector.broadcast %cst_24 : f32 to vector<96x4xf32>
    %88 = arith.mulf %87, %86 : vector<96x4xf32>
    %cst_25 = arith.constant 5.000000e-01 : f32
    %89 = vector.broadcast %cst_25 : f32 to vector<96x4xf32>
    %90 = arith.addf %88, %89 : vector<96x4xf32>
    %91 = vector.extract_strided_slice %90 {offsets = [0, 0], sizes = [32, 4], strides = [1, 1]} : vector<96x4xf32> to vector<32x4xf32>
    %92 = vector.extract_strided_slice %90 {offsets = [32, 0], sizes = [32, 4], strides = [1, 1]} : vector<96x4xf32> to vector<32x4xf32>
    %93 = vector.extract_strided_slice %90 {offsets = [64, 0], sizes = [32, 4], strides = [1, 1]} : vector<96x4xf32> to vector<32x4xf32>
    %94 = vector.extract_strided_slice %85 {offsets = [96, 0], sizes = [32, 4], strides = [1, 1]} : vector<128x4xf32> to vector<32x4xf32>
    %95 = arith.mulf %92, %75 : vector<32x4xf32>
    %96 = arith.mulf %91, %94 : vector<32x4xf32>
    %97 = arith.addf %95, %96 : vector<32x4xf32>
    %98 = math.tanh %97 : vector<32x4xf32>
    %99 = arith.mulf %93, %98 : vector<32x4xf32>
    %c4_i32 = arith.constant 4 : i32
    %100 = arith.index_cast %c4_i32 : i32 to index
    %c0_26 = arith.constant 0 : index
    %101 = vector.load %arg1[%100, %c0_26] : memref<8x4xf32, #tpu.memory_space<vmem>>, vector<1x4xf32>
    %cst_27 = arith.constant dense<0.000000e+00> : vector<128x4xf32>
    %102 = tpu.matmul %3, %99, %cst_27 {dimension_numbers = #tpu.dot_dimension_numbers<[1], [0], [0], [1], [0, 0, 1, 1], [], []>} : vector<128x32xf32>, vector<32x4xf32>, vector<128x4xf32> -> vector<128x4xf32>
    %103 = vector.broadcast %101 : vector<1x4xf32> to vector<128x4xf32>
    %104 = arith.mulf %103, %6 : vector<128x4xf32>
    %105 = arith.addf %102, %104 : vector<128x4xf32>
    %106 = arith.addf %105, %9 : vector<128x4xf32>
    %107 = math.tanh %106 : vector<128x4xf32>
    %108 = vector.extract_strided_slice %107 {offsets = [0, 0], sizes = [96, 4], strides = [1, 1]} : vector<128x4xf32> to vector<96x4xf32>
    %cst_28 = arith.constant 5.000000e-01 : f32
    %109 = vector.broadcast %cst_28 : f32 to vector<96x4xf32>
    %110 = arith.mulf %109, %108 : vector<96x4xf32>
    %cst_29 = arith.constant 5.000000e-01 : f32
    %111 = vector.broadcast %cst_29 : f32 to vector<96x4xf32>
    %112 = arith.addf %110, %111 : vector<96x4xf32>
    %113 = vector.extract_strided_slice %112 {offsets = [0, 0], sizes = [32, 4], strides = [1, 1]} : vector<96x4xf32> to vector<32x4xf32>
    %114 = vector.extract_strided_slice %112 {offsets = [32, 0], sizes = [32, 4], strides = [1, 1]} : vector<96x4xf32> to vector<32x4xf32>
    %115 = vector.extract_strided_slice %112 {offsets = [64, 0], sizes = [32, 4], strides = [1, 1]} : vector<96x4xf32> to vector<32x4xf32>
    %116 = vector.extract_strided_slice %107 {offsets = [96, 0], sizes = [32, 4], strides = [1, 1]} : vector<128x4xf32> to vector<32x4xf32>
    %117 = arith.mulf %114, %97 : vector<32x4xf32>
    %118 = arith.mulf %113, %116 : vector<32x4xf32>
    %119 = arith.addf %117, %118 : vector<32x4xf32>
    %120 = math.tanh %119 : vector<32x4xf32>
    %121 = arith.mulf %115, %120 : vector<32x4xf32>
    %c5_i32 = arith.constant 5 : i32
    %122 = arith.index_cast %c5_i32 : i32 to index
    %c0_30 = arith.constant 0 : index
    %123 = vector.load %arg1[%122, %c0_30] : memref<8x4xf32, #tpu.memory_space<vmem>>, vector<1x4xf32>
    %cst_31 = arith.constant dense<0.000000e+00> : vector<128x4xf32>
    %124 = tpu.matmul %3, %121, %cst_31 {dimension_numbers = #tpu.dot_dimension_numbers<[1], [0], [0], [1], [0, 0, 1, 1], [], []>} : vector<128x32xf32>, vector<32x4xf32>, vector<128x4xf32> -> vector<128x4xf32>
    %125 = vector.broadcast %123 : vector<1x4xf32> to vector<128x4xf32>
    %126 = arith.mulf %125, %6 : vector<128x4xf32>
    %127 = arith.addf %124, %126 : vector<128x4xf32>
    %128 = arith.addf %127, %9 : vector<128x4xf32>
    %129 = math.tanh %128 : vector<128x4xf32>
    %130 = vector.extract_strided_slice %129 {offsets = [0, 0], sizes = [96, 4], strides = [1, 1]} : vector<128x4xf32> to vector<96x4xf32>
    %cst_32 = arith.constant 5.000000e-01 : f32
    %131 = vector.broadcast %cst_32 : f32 to vector<96x4xf32>
    %132 = arith.mulf %131, %130 : vector<96x4xf32>
    %cst_33 = arith.constant 5.000000e-01 : f32
    %133 = vector.broadcast %cst_33 : f32 to vector<96x4xf32>
    %134 = arith.addf %132, %133 : vector<96x4xf32>
    %135 = vector.extract_strided_slice %134 {offsets = [0, 0], sizes = [32, 4], strides = [1, 1]} : vector<96x4xf32> to vector<32x4xf32>
    %136 = vector.extract_strided_slice %134 {offsets = [32, 0], sizes = [32, 4], strides = [1, 1]} : vector<96x4xf32> to vector<32x4xf32>
    %137 = vector.extract_strided_slice %134 {offsets = [64, 0], sizes = [32, 4], strides = [1, 1]} : vector<96x4xf32> to vector<32x4xf32>
    %138 = vector.extract_strided_slice %129 {offsets = [96, 0], sizes = [32, 4], strides = [1, 1]} : vector<128x4xf32> to vector<32x4xf32>
    %139 = arith.mulf %136, %119 : vector<32x4xf32>
    %140 = arith.mulf %135, %138 : vector<32x4xf32>
    %141 = arith.addf %139, %140 : vector<32x4xf32>
    %142 = math.tanh %141 : vector<32x4xf32>
    %143 = arith.mulf %137, %142 : vector<32x4xf32>
    %c6_i32 = arith.constant 6 : i32
    %144 = arith.index_cast %c6_i32 : i32 to index
    %c0_34 = arith.constant 0 : index
    %145 = vector.load %arg1[%144, %c0_34] : memref<8x4xf32, #tpu.memory_space<vmem>>, vector<1x4xf32>
    %cst_35 = arith.constant dense<0.000000e+00> : vector<128x4xf32>
    %146 = tpu.matmul %3, %143, %cst_35 {dimension_numbers = #tpu.dot_dimension_numbers<[1], [0], [0], [1], [0, 0, 1, 1], [], []>} : vector<128x32xf32>, vector<32x4xf32>, vector<128x4xf32> -> vector<128x4xf32>
    %147 = vector.broadcast %145 : vector<1x4xf32> to vector<128x4xf32>
    %148 = arith.mulf %147, %6 : vector<128x4xf32>
    %149 = arith.addf %146, %148 : vector<128x4xf32>
    %150 = arith.addf %149, %9 : vector<128x4xf32>
    %151 = math.tanh %150 : vector<128x4xf32>
    %152 = vector.extract_strided_slice %151 {offsets = [0, 0], sizes = [96, 4], strides = [1, 1]} : vector<128x4xf32> to vector<96x4xf32>
    %cst_36 = arith.constant 5.000000e-01 : f32
    %153 = vector.broadcast %cst_36 : f32 to vector<96x4xf32>
    %154 = arith.mulf %153, %152 : vector<96x4xf32>
    %cst_37 = arith.constant 5.000000e-01 : f32
    %155 = vector.broadcast %cst_37 : f32 to vector<96x4xf32>
    %156 = arith.addf %154, %155 : vector<96x4xf32>
    %157 = vector.extract_strided_slice %156 {offsets = [0, 0], sizes = [32, 4], strides = [1, 1]} : vector<96x4xf32> to vector<32x4xf32>
    %158 = vector.extract_strided_slice %156 {offsets = [32, 0], sizes = [32, 4], strides = [1, 1]} : vector<96x4xf32> to vector<32x4xf32>
    %159 = vector.extract_strided_slice %156 {offsets = [64, 0], sizes = [32, 4], strides = [1, 1]} : vector<96x4xf32> to vector<32x4xf32>
    %160 = vector.extract_strided_slice %151 {offsets = [96, 0], sizes = [32, 4], strides = [1, 1]} : vector<128x4xf32> to vector<32x4xf32>
    %161 = arith.mulf %158, %141 : vector<32x4xf32>
    %162 = arith.mulf %157, %160 : vector<32x4xf32>
    %163 = arith.addf %161, %162 : vector<32x4xf32>
    %164 = math.tanh %163 : vector<32x4xf32>
    %165 = arith.mulf %159, %164 : vector<32x4xf32>
    %c7_i32 = arith.constant 7 : i32
    %166 = arith.index_cast %c7_i32 : i32 to index
    %c0_38 = arith.constant 0 : index
    %167 = vector.load %arg1[%166, %c0_38] : memref<8x4xf32, #tpu.memory_space<vmem>>, vector<1x4xf32>
    %cst_39 = arith.constant dense<0.000000e+00> : vector<128x4xf32>
    %168 = tpu.matmul %3, %165, %cst_39 {dimension_numbers = #tpu.dot_dimension_numbers<[1], [0], [0], [1], [0, 0, 1, 1], [], []>} : vector<128x32xf32>, vector<32x4xf32>, vector<128x4xf32> -> vector<128x4xf32>
    %169 = vector.broadcast %167 : vector<1x4xf32> to vector<128x4xf32>
    %170 = arith.mulf %169, %6 : vector<128x4xf32>
    %171 = arith.addf %168, %170 : vector<128x4xf32>
    %172 = arith.addf %171, %9 : vector<128x4xf32>
    %173 = math.tanh %172 : vector<128x4xf32>
    %174 = vector.extract_strided_slice %173 {offsets = [0, 0], sizes = [96, 4], strides = [1, 1]} : vector<128x4xf32> to vector<96x4xf32>
    %cst_40 = arith.constant 5.000000e-01 : f32
    %175 = vector.broadcast %cst_40 : f32 to vector<96x4xf32>
    %176 = arith.mulf %175, %174 : vector<96x4xf32>
    %cst_41 = arith.constant 5.000000e-01 : f32
    %177 = vector.broadcast %cst_41 : f32 to vector<96x4xf32>
    %178 = arith.addf %176, %177 : vector<96x4xf32>
    %179 = vector.extract_strided_slice %178 {offsets = [0, 0], sizes = [32, 4], strides = [1, 1]} : vector<96x4xf32> to vector<32x4xf32>
    %180 = vector.extract_strided_slice %178 {offsets = [32, 0], sizes = [32, 4], strides = [1, 1]} : vector<96x4xf32> to vector<32x4xf32>
    %181 = vector.extract_strided_slice %178 {offsets = [64, 0], sizes = [32, 4], strides = [1, 1]} : vector<96x4xf32> to vector<32x4xf32>
    %182 = vector.extract_strided_slice %173 {offsets = [96, 0], sizes = [32, 4], strides = [1, 1]} : vector<128x4xf32> to vector<32x4xf32>
    %183 = arith.mulf %180, %163 : vector<32x4xf32>
    %184 = arith.mulf %179, %182 : vector<32x4xf32>
    %185 = arith.addf %183, %184 : vector<32x4xf32>
    %186 = math.tanh %185 : vector<32x4xf32>
    %187 = arith.mulf %181, %186 : vector<32x4xf32>
    %c8_i32 = arith.constant 8 : i32
    %c0_42 = arith.constant 0 : index
    %c0_43 = arith.constant 0 : index
    %188 = vector.load %arg8[%c0_42, %c0_43] : memref<32x4xf32, #tpu.memory_space<vmem>>, vector<32x4xf32>
    tpu.vector_store %arg8[%c0_42, %c0_43], %187 {strides = array<i32>} : memref<32x4xf32, #tpu.memory_space<vmem>>, vector<32x4xf32>,
    %c0_44 = arith.constant 0 : index
    %c0_45 = arith.constant 0 : index
    %189 = vector.load %arg9[%c0_44, %c0_45] : memref<32x4xf32, #tpu.memory_space<vmem>>, vector<32x4xf32>
    tpu.vector_store %arg9[%c0_44, %c0_45], %185 {strides = array<i32>} : memref<32x4xf32, #tpu.memory_space<vmem>>, vector<32x4xf32>,
    %c0_i32_46 = arith.constant 0 : i32
    %190 = arith.cmpi eq, %arg0, %c0_i32_46 : i32
    %191 = arith.extui %190 : i1 to i32
    %c0_i32_47 = arith.constant 0 : i32
    %192 = arith.cmpi ne, %191, %c0_i32_47 : i32
    scf.if %192 {
      %c0_48 = arith.constant 0 : index
      %c0_49 = arith.constant 0 : index
      %193 = vector.load %arg5[%c0_48, %c0_49] : memref<5x32xf32, #tpu.memory_space<vmem>>, vector<5x32xf32>
      %c0_50 = arith.constant 0 : index
      %c0_51 = arith.constant 0 : index
      %194 = vector.load %arg8[%c0_50, %c0_51] : memref<32x4xf32, #tpu.memory_space<vmem>>, vector<32x4xf32>
      %cst_52 = arith.constant dense<0.000000e+00> : vector<5x4xf32>
      %195 = tpu.matmul %193, %194, %cst_52 {dimension_numbers = #tpu.dot_dimension_numbers<[1], [0], [0], [1], [0, 0, 1, 1], [], []>} : vector<5x32xf32>, vector<32x4xf32>, vector<5x4xf32> -> vector<5x4xf32>
      %c0_53 = arith.constant 0 : index
      %c0_54 = arith.constant 0 : index
      %196 = vector.load %arg6[%c0_53, %c0_54] : memref<5x1xf32, #tpu.memory_space<vmem>>, vector<5x1xf32>
      %197 = vector.broadcast %196 : vector<5x1xf32> to vector<5x4xf32>
      %198 = arith.addf %195, %197 : vector<5x4xf32>
      %c0_55 = arith.constant 0 : index
      %c0_56 = arith.constant 0 : index
      %199 = vector.load %arg7[%c0_55, %c0_56] : memref<5x4xf32, #tpu.memory_space<vmem>>, vector<5x4xf32>
      tpu.vector_store %arg7[%c0_55, %c0_56], %198 {strides = array<i32>} : memref<5x4xf32, #tpu.memory_space<vmem>>, vector<5x4xf32>,
    } else {
    }
    return
  }
  func.func @transform_0(%arg0: i32) -> (i32, i32) {
    %c0_i32 = arith.constant 0 : i32
    %c0_i32_0 = arith.constant 0 : i32
    return %arg0, %c0_i32 : i32, i32
  }
  func.func @transform_1(%arg0: i32) -> (i32, i32) {
    %c0_i32 = arith.constant 0 : i32
    %c0_i32_0 = arith.constant 0 : i32
    %c0_i32_1 = arith.constant 0 : i32
    return %c0_i32, %c0_i32_0 : i32, i32
  }
  func.func @transform_2(%arg0: i32) -> (i32, i32) {
    %c0_i32 = arith.constant 0 : i32
    %c0_i32_0 = arith.constant 0 : i32
    %c0_i32_1 = arith.constant 0 : i32
    return %c0_i32, %c0_i32_0 : i32, i32
  }
  func.func @transform_3(%arg0: i32) -> (i32, i32) {
    %c0_i32 = arith.constant 0 : i32
    %c0_i32_0 = arith.constant 0 : i32
    %c0_i32_1 = arith.constant 0 : i32
    return %c0_i32, %c0_i32_0 : i32, i32
  }
  func.func @transform_4(%arg0: i32) -> (i32, i32) {
    %c0_i32 = arith.constant 0 : i32
    %c0_i32_0 = arith.constant 0 : i32
    %c0_i32_1 = arith.constant 0 : i32
    return %c0_i32, %c0_i32_0 : i32, i32
  }
  func.func @transform_5(%arg0: i32) -> (i32, i32) {
    %c0_i32 = arith.constant 0 : i32
    %c0_i32_0 = arith.constant 0 : i32
    %c0_i32_1 = arith.constant 0 : i32
    return %c0_i32, %c0_i32_0 : i32, i32
  }
  func.func @transform_6(%arg0: i32) -> (i32, i32) {
    %c0_i32 = arith.constant 0 : i32
    %c0_i32_0 = arith.constant 0 : i32
    %c0_i32_1 = arith.constant 0 : i32
    return %c0_i32, %c0_i32_0 : i32, i32
  }
}

</mosaic_0001>

<llo_original>
// kernel: rnn_forward.1
$region0: #{rnn_forward.1}
  #allocation0 [shape = 'u32[]', space=smem, size = 0x4, offset = 0x4, fixed_abs, tag = 'smem constant byte address 0x4 - core index']
  #allocation1 [shape = 'u32[144,128]{1,0:T(1,128)}', space=vmem, size = 0x12000, scoped, tag = 'internal scratch']
  #allocation2 [shape = 'f32[32,4]{1,0:T(8,128)}', space=vmem, size = 0x4000, scoped, tag = 'scratch operand']
  #allocation3 [shape = 'f32[32,4]{1,0:T(8,128)}', space=vmem, size = 0x4000, scoped, tag = 'scratch operand']
  %s0 = inlined_call_operand.vmem [shape: f32[8,4], index: 0, kind: input, shape index: {}]
  %s1 = inlined_call_operand.vmem [shape: f32[128,32], index: 1, kind: input, shape index: {}]
  %s2 = inlined_call_operand.vmem [shape: f32[128,1], index: 2, kind: input, shape index: {}]
  %s3 = inlined_call_operand.vmem [shape: f32[128,1], index: 3, kind: input, shape index: {}]
  %s4 = inlined_call_operand.vmem [shape: f32[5,32], index: 4, kind: input, shape index: {}]
  %s5 = inlined_call_operand.vmem [shape: f32[5,1], index: 5, kind: input, shape index: {}]
  %s6 = inlined_call_operand.vmem [shape: f32[5,4], index: 6, kind: output, shape index: {}]
  %s7 = sld [smem:[#allocation0]]
  $region42: #{rnn_forward.1} parent=0
    _
  %s9 = ssub.s32 1, %s7
  %s10 = scalar_select 0, %s9, %s7
  // Predicated region
  $region2: #{rnn_forward.1} parent=0 // pred_check
    _
  $region3: #{rnn_forward.1} parent=0 // pred_check_branch
    %12 = sbr.rel (0) target = $region5
  $region4: #{rnn_forward.1} parent=0 // pred_region
    _
  $region5: #{rnn_forward.1} parent=0 // pred_fallthru
    _
  // Predicated region
  $region6: #{rnn_forward.1} parent=0 // pred_check
    _
  $region7: #{rnn_forward.1} parent=0 // pred_check_branch
    %14 = sbr.rel (0) target = $region9
  $region8: #{rnn_forward.1} parent=0 // pred_region
    _
  $region9: #{rnn_forward.1} parent=0 // pred_fallthru
    _
  // Predicated region
  $region10: #{rnn_forward.1} parent=0 // pred_check
    _
  $region11: #{rnn_forward.1} parent=0 // pred_check_branch
    %16 = sbr.rel (0) target = $region13
  $region12: #{rnn_forward.1} parent=0 // pred_region
    _
  $region13: #{rnn_forward.1} parent=0 // pred_fallthru
    _
  // Predicated region
  $region14: #{rnn_forward.1} parent=0 // pred_check
    _
  $region15: #{rnn_forward.1} parent=0 // pred_check_branch
    %18 = sbr.rel (0) target = $region17
  $region16: #{rnn_forward.1} parent=0 // pred_region
    _
  $region17: #{rnn_forward.1} parent=0 // pred_fallthru
    _
  // Predicated region
  $region18: #{rnn_forward.1} parent=0 // pred_check
    _
  $region19: #{rnn_forward.1} parent=0 // pred_check_branch
    %20 = sbr.rel (0) target = $region21
  $region20: #{rnn_forward.1} parent=0 // pred_region
    _
  $region21: #{rnn_forward.1} parent=0 // pred_fallthru
    _
  // Predicated region
  $region22: #{rnn_forward.1} parent=0 // pred_check
    _
  $region23: #{rnn_forward.1} parent=0 // pred_check_branch
    %22 = sbr.rel (0) target = $region25
  $region24: #{rnn_forward.1} parent=0 // pred_region
    _
  $region25: #{rnn_forward.1} parent=0 // pred_fallthru
    _
  %p23 = scmp.eq.s32.totalorder 0, 0
  // Predicated region
  $region26: #{rnn_forward.1} parent=0 // pred_check
    %p24 = pneg %p23
  $region27: #{rnn_forward.1} parent=0 // pred_check_branch
    %26 = sbr.rel (%p24) target = $region29
  $region28: #{rnn_forward.1} parent=0 // pred_region
    %vm27 = vcmask 31744
    %28 = vst.msk [vmem:[#allocation2] sm:$0xff] %vm27, 0.0
    %29 = vst.msk [vmem:[#allocation2 + $0x8] sm:$0xff] %vm27, 0.0
    %30 = vst.msk [vmem:[#allocation2 + $0x10] sm:$0xff] %vm27, 0.0
    %31 = vst.msk [vmem:[#allocation2 + $0x18] sm:$0xff] %vm27, 0.0
    %32 = vst.msk [vmem:[#allocation3] sm:$0xff] %vm27, 0.0
    %33 = vst.msk [vmem:[#allocation3 + $0x8] sm:$0xff] %vm27, 0.0
    %34 = vst.msk [vmem:[#allocation3 + $0x10] sm:$0xff] %vm27, 0.0
    %35 = vst.msk [vmem:[#allocation3 + $0x18] sm:$0xff] %vm27, 0.0
  $region29: #{rnn_forward.1} parent=0 // pred_fallthru
    _
  %v36 = vld [vmem:[%s1] sm:$0xff]
  %v37 = vld [vmem:[%s1 + $0x8] sm:$0xff]
  %v38 = vld [vmem:[%s1 + $0x10] sm:$0xff]
  %v39 = vld [vmem:[%s1 + $0x18] sm:$0xff]
  %v40 = vld [vmem:[%s1 + $0x20] sm:$0xff]
  %v41 = vld [vmem:[%s1 + $0x28] sm:$0xff]
  %v42 = vld [vmem:[%s1 + $0x30] sm:$0xff]
  %v43 = vld [vmem:[%s1 + $0x38] sm:$0xff]
  %v44 = vld [vmem:[%s1 + $0x40] sm:$0xff]
  %v45 = vld [vmem:[%s1 + $0x48] sm:$0xff]
  %v46 = vld [vmem:[%s1 + $0x50] sm:$0xff]
  %v47 = vld [vmem:[%s1 + $0x58] sm:$0xff]
  %v48 = vld [vmem:[%s1 + $0x60] sm:$0xff]
  %v49 = vld [vmem:[%s1 + $0x68] sm:$0xff]
  %v50 = vld [vmem:[%s1 + $0x70] sm:$0xff]
  %v51 = vld [vmem:[%s1 + $0x78] sm:$0xff]
  %v52 = vld [vmem:[%s2] sm:$0xff]
  %v53 = vld [vmem:[%s2 + $0x8] sm:$0xff]
  %v54 = vld [vmem:[%s2 + $0x10] sm:$0xff]
  %v55 = vld [vmem:[%s2 + $0x18] sm:$0xff]
  %v56 = vld [vmem:[%s2 + $0x20] sm:$0xff]
  %v57 = vld [vmem:[%s2 + $0x28] sm:$0xff]
  %v58 = vld [vmem:[%s2 + $0x30] sm:$0xff]
  %v59 = vld [vmem:[%s2 + $0x38] sm:$0xff]
  %v60 = vld [vmem:[%s2 + $0x40] sm:$0xff]
  %v61 = vld [vmem:[%s2 + $0x48] sm:$0xff]
  %v62 = vld [vmem:[%s2 + $0x50] sm:$0xff]
  %v63 = vld [vmem:[%s2 + $0x58] sm:$0xff]
  %v64 = vld [vmem:[%s2 + $0x60] sm:$0xff]
  %v65 = vld [vmem:[%s2 + $0x68] sm:$0xff]
  %v66 = vld [vmem:[%s2 + $0x70] sm:$0xff]
  %v67 = vld [vmem:[%s2 + $0x78] sm:$0xff]
  %69 = vset.pattern.permute.xlu0 0
  %70 = vperm.xlu0 %69, %v52
  %v71 = vpop.permute.xlu0 %70
  %74 = vset.pattern.permute.xlu0 0
  %75 = vperm.xlu0 %74, %v53
  %v76 = vpop.permute.xlu0 %75
  %79 = vset.pattern.permute.xlu0 0
  %80 = vperm.xlu0 %79, %v54
  %v81 = vpop.permute.xlu0 %80
  %84 = vset.pattern.permute.xlu0 0
  %85 = vperm.xlu0 %84, %v55
  %v86 = vpop.permute.xlu0 %85
  %89 = vset.pattern.permute.xlu0 0
  %90 = vperm.xlu0 %89, %v56
  %v91 = vpop.permute.xlu0 %90
  %94 = vset.pattern.permute.xlu0 0
  %95 = vperm.xlu0 %94, %v57
  %v96 = vpop.permute.xlu0 %95
  %99 = vset.pattern.permute.xlu0 0
  %100 = vperm.xlu0 %99, %v58
  %v101 = vpop.permute.xlu0 %100
  %104 = vset.pattern.permute.xlu0 0
  %105 = vperm.xlu0 %104, %v59
  %v106 = vpop.permute.xlu0 %105
  %109 = vset.pattern.permute.xlu0 0
  %110 = vperm.xlu0 %109, %v60
  %v111 = vpop.permute.xlu0 %110
  %114 = vset.pattern.permute.xlu0 0
  %115 = vperm.xlu0 %114, %v61
  %v116 = vpop.permute.xlu0 %115
  %119 = vset.pattern.permute.xlu0 0
  %120 = vperm.xlu0 %119, %v62
  %v121 = vpop.permute.xlu0 %120
  %124 = vset.pattern.permute.xlu0 0
  %125 = vperm.xlu0 %124, %v63
  %v126 = vpop.permute.xlu0 %125
  %129 = vset.pattern.permute.xlu0 0
  %130 = vperm.xlu0 %129, %v64
  %v131 = vpop.permute.xlu0 %130
  %134 = vset.pattern.permute.xlu0 0
  %135 = vperm.xlu0 %134, %v65
  %v136 = vpop.permute.xlu0 %135
  %139 = vset.pattern.permute.xlu0 0
  %140 = vperm.xlu0 %139, %v66
  %v141 = vpop.permute.xlu0 %140
  %144 = vset.pattern.permute.xlu0 0
  %145 = vperm.xlu0 %144, %v67
  %v146 = vpop.permute.xlu0 %145
  %v148 = vld [vmem:[%s3] sm:$0xff]
  %v149 = vld [vmem:[%s3 + $0x8] sm:$0xff]
  %v150 = vld [vmem:[%s3 + $0x10] sm:$0xff]
  %v151 = vld [vmem:[%s3 + $0x18] sm:$0xff]
  %v152 = vld [vmem:[%s3 + $0x20] sm:$0xff]
  %v153 = vld [vmem:[%s3 + $0x28] sm:$0xff]
  %v154 = vld [vmem:[%s3 + $0x30] sm:$0xff]
  %v155 = vld [vmem:[%s3 + $0x38] sm:$0xff]
  %v156 = vld [vmem:[%s3 + $0x40] sm:$0xff]
  %v157 = vld [vmem:[%s3 + $0x48] sm:$0xff]
  %v158 = vld [vmem:[%s3 + $0x50] sm:$0xff]
  %v159 = vld [vmem:[%s3 + $0x58] sm:$0xff]
  %v160 = vld [vmem:[%s3 + $0x60] sm:$0xff]
  %v161 = vld [vmem:[%s3 + $0x68] sm:$0xff]
  %v162 = vld [vmem:[%s3 + $0x70] sm:$0xff]
  %v163 = vld [vmem:[%s3 + $0x78] sm:$0xff]
  %165 = vset.pattern.permute.xlu0 0
  %166 = vperm.xlu0 %165, %v148
  %v167 = vpop.permute.xlu0 %166
  %170 = vset.pattern.permute.xlu0 0
  %171 = vperm.xlu0 %170, %v149
  %v172 = vpop.permute.xlu0 %171
  %175 = vset.pattern.permute.xlu0 0
  %176 = vperm.xlu0 %175, %v150
  %v177 = vpop.permute.xlu0 %176
  %180 = vset.pattern.permute.xlu0 0
  %181 = vperm.xlu0 %180, %v151
  %v182 = vpop.permute.xlu0 %181
  %185 = vset.pattern.permute.xlu0 0
  %186 = vperm.xlu0 %185, %v152
  %v187 = vpop.permute.xlu0 %186
  %190 = vset.pattern.permute.xlu0 0
  %191 = vperm.xlu0 %190, %v153
  %v192 = vpop.permute.xlu0 %191
  %195 = vset.pattern.permute.xlu0 0
  %196 = vperm.xlu0 %195, %v154
  %v197 = vpop.permute.xlu0 %196
  %200 = vset.pattern.permute.xlu0 0
  %201 = vperm.xlu0 %200, %v155
  %v202 = vpop.permute.xlu0 %201
  %205 = vset.pattern.permute.xlu0 0
  %206 = vperm.xlu0 %205, %v156
  %v207 = vpop.permute.xlu0 %206
  %210 = vset.pattern.permute.xlu0 0
  %211 = vperm.xlu0 %210, %v157
  %v212 = vpop.permute.xlu0 %211
  %215 = vset.pattern.permute.xlu0 0
  %216 = vperm.xlu0 %215, %v158
  %v217 = vpop.permute.xlu0 %216
  %220 = vset.pattern.permute.xlu0 0
  %221 = vperm.xlu0 %220, %v159
  %v222 = vpop.permute.xlu0 %221
  %225 = vset.pattern.permute.xlu0 0
  %226 = vperm.xlu0 %225, %v160
  %v227 = vpop.permute.xlu0 %226
  %230 = vset.pattern.permute.xlu0 0
  %231 = vperm.xlu0 %230, %v161
  %v232 = vpop.permute.xlu0 %231
  %235 = vset.pattern.permute.xlu0 0
  %236 = vperm.xlu0 %235, %v162
  %v237 = vpop.permute.xlu0 %236
  %240 = vset.pattern.permute.xlu0 0
  %241 = vperm.xlu0 %240, %v163
  %v242 = vpop.permute.xlu0 %241
  %v244 = vld [vmem:[#allocation2] sm:$0xff]
  %v245 = vld [vmem:[#allocation2 + $0x8] sm:$0xff]
  %v246 = vld [vmem:[#allocation2 + $0x10] sm:$0xff]
  %v247 = vld [vmem:[#allocation2 + $0x18] sm:$0xff]
  %v248 = vld [vmem:[#allocation3] sm:$0xff]
  %v249 = vld [vmem:[#allocation3 + $0x8] sm:$0xff]
  %v250 = vld [vmem:[#allocation3 + $0x10] sm:$0xff]
  %v251 = vld [vmem:[#allocation3 + $0x18] sm:$0xff]
  %v252 = vld [vmem:[%s0] sm:$0x1]
  %v253 = vlaneseq
  %v254 = vshrl.u32 %v253, 7
  %v255 = vsub.s32 0, %v254
  %v256 = vrot.slane %v252, %v255
  %v257 = vmul.f32 %v256, %v71
  %v258 = vmul.f32 %v256, %v76
  %v259 = vmul.f32 %v256, %v81
  %v260 = vmul.f32 %v256, %v86
  %v261 = vmul.f32 %v256, %v91
  %v262 = vmul.f32 %v256, %v96
  %v263 = vmul.f32 %v256, %v101
  %v264 = vmul.f32 %v256, %v106
  %v265 = vmul.f32 %v256, %v111
  %v266 = vmul.f32 %v256, %v116
  %v267 = vmul.f32 %v256, %v121
  %v268 = vmul.f32 %v256, %v126
  %v269 = vmul.f32 %v256, %v131
  %v270 = vmul.f32 %v256, %v136
  %v271 = vmul.f32 %v256, %v141
  %v272 = vmul.f32 %v256, %v146
  %vm273 = vcmask 261120
  %v275 = vsel %vm273, %v36, 0
  %v278 = vsel %vm273, %v37, 0
  %v281 = vsel %vm273, %v38, 0
  %v284 = vsel %vm273, %v39, 0
  %v287 = vsel %vm273, %v40, 0
  %v290 = vsel %vm273, %v41, 0
  %v293 = vsel %vm273, %v42, 0
  %v296 = vsel %vm273, %v43, 0
  %v299 = vsel %vm273, %v44, 0
  %v302 = vsel %vm273, %v45, 0
  %v305 = vsel %vm273, %v46, 0
  %v308 = vsel %vm273, %v47, 0
  %v311 = vsel %vm273, %v48, 0
  %v314 = vsel %vm273, %v49, 0
  %v317 = vsel %vm273, %v50, 0
  %v320 = vsel %vm273, %v51, 0
  %322 = vmatprep.subr.mxu0 0.0
  %323 = vmatpush1.msra.mxu0 %v244
  %324 = vmatprep.subr.mxu0 0.0
  %325 = vmatpush1.msra.mxu0 %v245
  %326 = vmatprep.subr.mxu0 0.0
  %327 = vmatpush1.msra.mxu0 %v246
  %328 = vmatprep.subr.mxu0 0.0
  %329 = vmatpush1.msra.mxu0 %v247
  %330 = vmatprep.subr.mxu0 0.0
  %331 = vmatpush1.msra.mxu0 0.0
  %332 = vmatprep.subr.mxu0 0.0
  %333 = vmatpush1.msra.mxu0 0.0
  %334 = vmatprep.subr.mxu0 0.0
  %335 = vmatpush1.msra.mxu0 0.0
  %336 = vmatprep.subr.mxu0 0.0
  %337 = vmatpush1.msra.mxu0 0.0
  %338 = vmatprep.subr.mxu0 0.0
  %339 = vmatpush1.msra.mxu0 0.0
  %340 = vmatprep.subr.mxu0 0.0
  %341 = vmatpush1.msra.mxu0 0.0
  %342 = vmatprep.subr.mxu0 0.0
  %343 = vmatpush1.msra.mxu0 0.0
  %344 = vmatprep.subr.mxu0 0.0
  %345 = vmatpush1.msra.mxu0 0.0
  %346 = vmatprep.subr.mxu0 0.0
  %347 = vmatpush1.msra.mxu0 0.0
  %348 = vmatprep.subr.mxu0 0.0
  %349 = vmatpush1.msra.mxu0 0.0
  %350 = vmatprep.subr.mxu0 0.0
  %351 = vmatpush1.msra.mxu0 0.0
  %352 = vmatprep.subr.mxu0 0.0
  %353 = vmatpush1.msra.mxu0 0.0
  %354 = vmatprep.subr.mxu0 0.0
  %355 = vmatpush1.msra.mxu0 0.0
  %356 = vmatprep.subr.mxu0 0.0
  %357 = vmatpush1.msra.mxu0 0.0
  %358 = vmatprep.subr.mxu0 0.0
  %359 = vmatpush1.msra.mxu0 0.0
  %360 = vmatprep.subr.mxu0 0.0
  %361 = vmatpush1.msra.mxu0 0.0
  %362 = vmatprep.subr.mxu0 0.0
  %363 = vmatpush1.msra.mxu0 0.0
  %364 = vmatprep.subr.mxu0 0.0
  %365 = vmatpush1.msra.mxu0 0.0
  %366 = vmatprep.subr.mxu0 0.0
  %367 = vmatpush1.msra.mxu0 0.0
  %368 = vmatprep.subr.mxu0 0.0
  %369 = vmatpush1.msra.mxu0 0.0
  %370 = vmatprep.subr.mxu0 0.0
  %371 = vmatpush1.msra.mxu0 0.0
  %372 = vmatprep.subr.mxu0 0.0
  %373 = vmatpush1.msra.mxu0 0.0
  %374 = vmatprep.subr.mxu0 0.0
  %375 = vmatpush1.msra.mxu0 0.0
  %376 = vmatprep.subr.mxu0 0.0
  %377 = vmatpush1.msra.mxu0 0.0
  %378 = vmatprep.subr.mxu0 0.0
  %379 = vmatpush1.msra.mxu0 0.0
  %380 = vmatprep.subr.mxu0 0.0
  %381 = vmatpush1.msra.mxu0 0.0
  %382 = vmatprep.subr.mxu0 0.0
  %383 = vmatpush1.msra.mxu0 0.0
  %384 = vmatprep.subr.mxu0 0.0
  %385 = vmatpush1.msra.mxu0 0.0
  %386 = vmatprep.mubr.f32.mxu0 0.0
  %387 = vmatmul.mubr.f32.gmra.mrb[0].mxu0 %v275
  %v388 = vpop.f32.mrb[0].mxu0
  %v389 = vadd.f32 %v257, %v388
  %v390 = vpop.f32.mrb[0].mxu0
  %391 = vmatprep.mubr.f32.mxu0 0.0
  %392 = vmatmul.mubr.f32.gmra.mrb[0].mxu0 %v278
  %v393 = vpop.f32.mrb[0].mxu0
  %v394 = vadd.f32 %v258, %v393
  %v395 = vpop.f32.mrb[0].mxu0
  %396 = vmatprep.mubr.f32.mxu0 0.0
  %397 = vmatmul.mubr.f32.gmra.mrb[0].mxu0 %v281
  %v398 = vpop.f32.mrb[0].mxu0
  %v399 = vadd.f32 %v259, %v398
  %v400 = vpop.f32.mrb[0].mxu0
  %401 = vmatprep.mubr.f32.mxu0 0.0
  %402 = vmatmul.mubr.f32.gmra.mrb[0].mxu0 %v284
  %v403 = vpop.f32.mrb[0].mxu0
  %v404 = vadd.f32 %v260, %v403
  %v405 = vpop.f32.mrb[0].mxu0
  %406 = vmatprep.mubr.f32.mxu0 0.0
  %407 = vmatmul.mubr.f32.gmra.mrb[0].mxu0 %v287
  %v408 = vpop.f32.mrb[0].mxu0
  %v409 = vadd.f32 %v261, %v408
  %v410 = vpop.f32.mrb[0].mxu0
  %411 = vmatprep.mubr.f32.mxu0 0.0
  %412 = vmatmul.mubr.f32.gmra.mrb[0].mxu0 %v290
  %v413 = vpop.f32.mrb[0].mxu0
  %v414 = vadd.f32 %v262, %v413
  %v415 = vpop.f32.mrb[0].mxu0
  %416 = vmatprep.mubr.f32.mxu0 0.0
  %417 = vmatmul.mubr.f32.gmra.mrb[0].mxu0 %v293
  %v418 = vpop.f32.mrb[0].mxu0
  %v419 = vadd.f32 %v263, %v418
  %v420 = vpop.f32.mrb[0].mxu0
  %421 = vmatprep.mubr.f32.mxu0 0.0
  %422 = vmatmul.mubr.f32.gmra.mrb[0].mxu0 %v296
  %v423 = vpop.f32.mrb[0].mxu0
  %v424 = vadd.f32 %v264, %v423
  %v425 = vpop.f32.mrb[0].mxu0
  %426 = vmatprep.mubr.f32.mxu0 0.0
  %427 = vmatmul.mubr.f32.gmra.mrb[0].mxu0 %v299
  %v428 = vpop.f32.mrb[0].mxu0
  %v429 = vadd.f32 %v265, %v428
  %v430 = vpop.f32.mrb[0].mxu0
  %431 = vmatprep.mubr.f32.mxu0 0.0
  %432 = vmatmul.mubr.f32.gmra.mrb[0].mxu0 %v302
  %v433 = vpop.f32.mrb[0].mxu0
  %v434 = vadd.f32 %v266, %v433
  %v435 = vpop.f32.mrb[0].mxu0
  %436 = vmatprep.mubr.f32.mxu0 0.0
  %437 = vmatmul.mubr.f32.gmra.mrb[0].mxu0 %v305
  %v438 = vpop.f32.mrb[0].mxu0
  %v439 = vadd.f32 %v267, %v438
  %v440 = vpop.f32.mrb[0].mxu0
  %441 = vmatprep.mubr.f32.mxu0 0.0
  %442 = vmatmul.mubr.f32.gmra.mrb[0].mxu0 %v308
  %v443 = vpop.f32.mrb[0].mxu0
  %v444 = vadd.f32 %v268, %v443
  %v445 = vpop.f32.mrb[0].mxu0
  %446 = vmatprep.mubr.f32.mxu0 0.0
  %447 = vmatmul.mubr.f32.gmra.mrb[0].mxu0 %v311
  %v448 = vpop.f32.mrb[0].mxu0
  %v449 = vadd.f32 %v269, %v448
  %v450 = vpop.f32.mrb[0].mxu0
  %451 = vmatprep.mubr.f32.mxu0 0.0
  %452 = vmatmul.mubr.f32.gmra.mrb[0].mxu0 %v314
  %v453 = vpop.f32.mrb[0].mxu0
  %v454 = vadd.f32 %v270, %v453
  %v455 = vpop.f32.mrb[0].mxu0
  %456 = vmatprep.mubr.f32.mxu0 0.0
  %457 = vmatmul.mubr.f32.gmra.mrb[0].mxu0 %v317
  %v458 = vpop.f32.mrb[0].mxu0
  %v459 = vadd.f32 %v271, %v458
  %v460 = vpop.f32.mrb[0].mxu0
  %461 = vmatprep.mubr.f32.mxu0 0.0
  %462 = vmatmul.mubr.f32.gmra.mrb[0].mxu0 %v320
  %v463 = vpop.f32.mrb[0].mxu0
  %v464 = vadd.f32 %v272, %v463
  %v465 = vpop.f32.mrb[0].mxu0
  %466 = vdwg.mxu0
  %v467 = vadd.f32 %v389, %v167
  %v468 = vadd.f32 %v394, %v172
  %v469 = vadd.f32 %v399, %v177
  %v470 = vadd.f32 %v404, %v182
  %v471 = vadd.f32 %v409, %v187
  %v472 = vadd.f32 %v414, %v192
  %v473 = vadd.f32 %v419, %v197
  %v474 = vadd.f32 %v424, %v202
  %v475 = vadd.f32 %v429, %v207
  %v476 = vadd.f32 %v434, %v212
  %v477 = vadd.f32 %v439, %v217
  %v478 = vadd.f32 %v444, %v222
  %v479 = vadd.f32 %v449, %v227
  %v480 = vadd.f32 %v454, %v232
  %v481 = vadd.f32 %v459, %v237
  %v482 = vadd.f32 %v464, %v242
  %v483 = vtanh.pop %v467
  %v484 = vtanh.pop %v468
  %v485 = vtanh.pop %v469
  %v486 = vtanh.pop %v470
  %v487 = vtanh.pop %v471
  %v488 = vtanh.pop %v472
  %v489 = vtanh.pop %v473
  %v490 = vtanh.pop %v474
  %v491 = vtanh.pop %v475
  %v492 = vtanh.pop %v476
  %v493 = vtanh.pop %v477
  %v494 = vtanh.pop %v478
  %v495 = vtanh.pop %v479
  %v496 = vtanh.pop %v480
  %v497 = vtanh.pop %v481
  %v498 = vtanh.pop %v482
  %v499 = vmul.f32 %v483, 0.5
  %v500 = vmul.f32 %v484, 0.5
  %v501 = vmul.f32 %v485, 0.5
  %v502 = vmul.f32 %v486, 0.5
  %v503 = vmul.f32 %v487, 0.5
  %v504 = vmul.f32 %v488, 0.5
  %v505 = vmul.f32 %v489, 0.5
  %v506 = vmul.f32 %v490, 0.5
  %v507 = vmul.f32 %v491, 0.5
  %v508 = vmul.f32 %v492, 0.5
  %v509 = vmul.f32 %v493, 0.5
  %v510 = vmul.f32 %v494, 0.5
  %v511 = vadd.f32 %v499, 0.5
  %v512 = vadd.f32 %v500, 0.5
  %v513 = vadd.f32 %v501, 0.5
  %v514 = vadd.f32 %v502, 0.5
  %v515 = vadd.f32 %v503, 0.5
  %v516 = vadd.f32 %v504, 0.5
  %v517 = vadd.f32 %v505, 0.5
  %v518 = vadd.f32 %v506, 0.5
  %v519 = vadd.f32 %v507, 0.5
  %v520 = vadd.f32 %v508, 0.5
  %v521 = vadd.f32 %v509, 0.5
  %v522 = vadd.f32 %v510, 0.5
  %v523 = vmul.f32 %v515, %v248
  %v524 = vmul.f32 %v516, %v249
  %v525 = vmul.f32 %v517, %v250
  %v526 = vmul.f32 %v518, %v251
  %v527 = vmul.f32 %v511, %v495
  %v528 = vmul.f32 %v512, %v496
  %v529 = vmul.f32 %v513, %v497
  %v530 = vmul.f32 %v514, %v498
  %v531 = vadd.f32 %v523, %v527
  %v532 = vadd.f32 %v524, %v528
  %v533 = vadd.f32 %v525, %v529
  %v534 = vadd.f32 %v526, %v530
  %v535 = vtanh.pop %v531
  %v536 = vtanh.pop %v532
  %v537 = vtanh.pop %v533
  %v538 = vtanh.pop %v534
  %v539 = vmul.f32 %v519, %v535
  %v540 = vmul.f32 %v520, %v536
  %v541 = vmul.f32 %v521, %v537
  %v542 = vmul.f32 %v522, %v538
  %v543 = vld [vmem:[%s0 + $0x1] sm:$0x1]
  %v544 = vlaneseq
  %v545 = vshrl.u32 %v544, 7
  %v546 = vsub.s32 0, %v545
  %v547 = vrot.slane %v543, %v546
  %v548 = vmul.f32 %v547, %v71
  %v549 = vmul.f32 %v547, %v76
  %v550 = vmul.f32 %v547, %v81
  %v551 = vmul.f32 %v547, %v86
  %v552 = vmul.f32 %v547, %v91
  %v553 = vmul.f32 %v547, %v96
  %v554 = vmul.f32 %v547, %v101
  %v555 = vmul.f32 %v547, %v106
  %v556 = vmul.f32 %v547, %v111
  %v557 = vmul.f32 %v547, %v116
  %v558 = vmul.f32 %v547, %v121
  %v559 = vmul.f32 %v547, %v126
  %v560 = vmul.f32 %v547, %v131
  %v561 = vmul.f32 %v547, %v136
  %v562 = vmul.f32 %v547, %v141
  %v563 = vmul.f32 %v547, %v146
  %564 = vmatprep.subr.mxu0 0.0
  %565 = vmatpush1.msra.mxu0 %v539
  %566 = vmatprep.subr.mxu0 0.0
  %567 = vmatpush1.msra.mxu0 %v540
  %568 = vmatprep.subr.mxu0 0.0
  %569 = vmatpush1.msra.mxu0 %v541
  %570 = vmatprep.subr.mxu0 0.0
  %571 = vmatpush1.msra.mxu0 %v542
  %572 = vmatprep.subr.mxu0 0.0
  %573 = vmatpush1.msra.mxu0 0.0
  %574 = vmatprep.subr.mxu0 0.0
  %575 = vmatpush1.msra.mxu0 0.0
  %576 = vmatprep.subr.mxu0 0.0
  %577 = vmatpush1.msra.mxu0 0.0
  %578 = vmatprep.subr.mxu0 0.0
  %579 = vmatpush1.msra.mxu0 0.0
  %580 = vmatprep.subr.mxu0 0.0
  %581 = vmatpush1.msra.mxu0 0.0
  %582 = vmatprep.subr.mxu0 0.0
  %583 = vmatpush1.msra.mxu0 0.0
  %584 = vmatprep.subr.mxu0 0.0
  %585 = vmatpush1.msra.mxu0 0.0
  %586 = vmatprep.subr.mxu0 0.0
  %587 = vmatpush1.msra.mxu0 0.0
  %588 = vmatprep.subr.mxu0 0.0
  %589 = vmatpush1.msra.mxu0 0.0
  %590 = vmatprep.subr.mxu0 0.0
  %591 = vmatpush1.msra.mxu0 0.0
  %592 = vmatprep.subr.mxu0 0.0
  %593 = vmatpush1.msra.mxu0 0.0
  %594 = vmatprep.subr.mxu0 0.0
  %595 = vmatpush1.msra.mxu0 0.0
  %596 = vmatprep.subr.mxu0 0.0
  %597 = vmatpush1.msra.mxu0 0.0
  %598 = vmatprep.subr.mxu0 0.0
  %599 = vmatpush1.msra.mxu0 0.0
  %600 = vmatprep.subr.mxu0 0.0
  %601 = vmatpush1.msra.mxu0 0.0
  %602 = vmatprep.subr.mxu0 0.0
  %603 = vmatpush1.msra.mxu0 0.0
  %604 = vmatprep.subr.mxu0 0.0
  %605 = vmatpush1.msra.mxu0 0.0
  %606 = vmatprep.subr.mxu0 0.0
  %607 = vmatpush1.msra.mxu0 0.0
  %608 = vmatprep.subr.mxu0 0.0
  %609 = vmatpush1.msra.mxu0 0.0
  %610 = vmatprep.subr.mxu0 0.0
  %611 = vmatpush1.msra.mxu0 0.0
  %612 = vmatprep.subr.mxu0 0.0
  %613 = vmatpush1.msra.mxu0 0.0
  %614 = vmatprep.subr.mxu0 0.0
  %615 = vmatpush1.msra.mxu0 0.0
  %616 = vmatprep.subr.mxu0 0.0
  %617 = vmatpush1.msra.mxu0 0.0
  %618 = vmatprep.subr.mxu0 0.0
  %619 = vmatpush1.msra.mxu0 0.0
  %620 = vmatprep.subr.mxu0 0.0
  %621 = vmatpush1.msra.mxu0 0.0
  %622 = vmatprep.subr.mxu0 0.0
  %623 = vmatpush1.msra.mxu0 0.0
  %624 = vmatprep.subr.mxu0 0.0
  %625 = vmatpush1.msra.mxu0 0.0
  %626 = vmatprep.subr.mxu0 0.0
  %627 = vmatpush1.msra.mxu0 0.0
  %628 = vmatprep.mubr.f32.mxu0 0.0
  %629 = vmatmul.mubr.f32.gmra.mrb[0].mxu0 %v275
  %v630 = vpop.f32.mrb[0].mxu0
  %v631 = vadd.f32 %v548, %v630
  %v632 = vpop.f32.mrb[0].mxu0
  %633 = vmatprep.mubr.f32.mxu0 0.0
  %634 = vmatmul.mubr.f32.gmra.mrb[0].mxu0 %v278
  %v635 = vpop.f32.mrb[0].mxu0
  %v636 = vadd.f32 %v549, %v635
  %v637 = vpop.f32.mrb[0].mxu0
  %638 = vmatprep.mubr.f32.mxu0 0.0
  %639 = vmatmul.mubr.f32.gmra.mrb[0].mxu0 %v281
  %v640 = vpop.f32.mrb[0].mxu0
  %v641 = vadd.f32 %v550, %v640
  %v642 = vpop.f32.mrb[0].mxu0
  %643 = vmatprep.mubr.f32.mxu0 0.0
  %644 = vmatmul.mubr.f32.gmra.mrb[0].mxu0 %v284
  %v645 = vpop.f32.mrb[0].mxu0
  %v646 = vadd.f32 %v551, %v645
  %v647 = vpop.f32.mrb[0].mxu0
  %648 = vmatprep.mubr.f32.mxu0 0.0
  %649 = vmatmul.mubr.f32.gmra.mrb[0].mxu0 %v287
  %v650 = vpop.f32.mrb[0].mxu0
  %v651 = vadd.f32 %v552, %v650
  %v652 = vpop.f32.mrb[0].mxu0
  %653 = vmatprep.mubr.f32.mxu0 0.0
  %654 = vmatmul.mubr.f32.gmra.mrb[0].mxu0 %v290
  %v655 = vpop.f32.mrb[0].mxu0
  %v656 = vadd.f32 %v553, %v655
  %v657 = vpop.f32.mrb[0].mxu0
  %658 = vmatprep.mubr.f32.mxu0 0.0
  %659 = vmatmul.mubr.f32.gmra.mrb[0].mxu0 %v293
  %v660 = vpop.f32.mrb[0].mxu0
  %v661 = vadd.f32 %v554, %v660
  %v662 = vpop.f32.mrb[0].mxu0
  %663 = vmatprep.mubr.f32.mxu0 0.0
  %664 = vmatmul.mubr.f32.gmra.mrb[0].mxu0 %v296
  %v665 = vpop.f32.mrb[0].mxu0
  %v666 = vadd.f32 %v555, %v665
  %v667 = vpop.f32.mrb[0].mxu0
  %668 = vmatprep.mubr.f32.mxu0 0.0
  %669 = vmatmul.mubr.f32.gmra.mrb[0].mxu0 %v299
  %v670 = vpop.f32.mrb[0].mxu0
  %v671 = vadd.f32 %v556, %v670
  %v672 = vpop.f32.mrb[0].mxu0
  %673 = vmatprep.mubr.f32.mxu0 0.0
  %674 = vmatmul.mubr.f32.gmra.mrb[0].mxu0 %v302
  %v675 = vpop.f32.mrb[0].mxu0
  %v676 = vadd.f32 %v557, %v675
  %v677 = vpop.f32.mrb[0].mxu0
  %678 = vmatprep.mubr.f32.mxu0 0.0
  %679 = vmatmul.mubr.f32.gmra.mrb[0].mxu0 %v305
  %v680 = vpop.f32.mrb[0].mxu0
  %v681 = vadd.f32 %v558, %v680
  %v682 = vpop.f32.mrb[0].mxu0
  %683 = vmatprep.mubr.f32.mxu0 0.0
  %684 = vmatmul.mubr.f32.gmra.mrb[0].mxu0 %v308
  %v685 = vpop.f32.mrb[0].mxu0
  %v686 = vadd.f32 %v559, %v685
  %v687 = vpop.f32.mrb[0].mxu0
  %688 = vmatprep.mubr.f32.mxu0 0.0
  %689 = vmatmul.mubr.f32.gmra.mrb[0].mxu0 %v311
  %v690 = vpop.f32.mrb[0].mxu0
  %v691 = vadd.f32 %v560, %v690
  %v692 = vpop.f32.mrb[0].mxu0
  %693 = vmatprep.mubr.f32.mxu0 0.0
  %694 = vmatmul.mubr.f32.gmra.mrb[0].mxu0 %v314
  %v695 = vpop.f32.mrb[0].mxu0
  %v696 = vadd.f32 %v561, %v695
  %v697 = vpop.f32.mrb[0].mxu0
  %698 = vmatprep.mubr.f32.mxu0 0.0
  %699 = vmatmul.mubr.f32.gmra.mrb[0].mxu0 %v317
  %v700 = vpop.f32.mrb[0].mxu0
  %v701 = vadd.f32 %v562, %v700
  %v702 = vpop.f32.mrb[0].mxu0
  %703 = vmatprep.mubr.f32.mxu0 0.0
  %704 = vmatmul.mubr.f32.gmra.mrb[0].mxu0 %v320
  %v705 = vpop.f32.mrb[0].mxu0
  %v706 = vadd.f32 %v563, %v705
  %v707 = vpop.f32.mrb[0].mxu0
  %708 = vdwg.mxu0
  %v709 = vadd.f32 %v631, %v167
  %v710 = vadd.f32 %v636, %v172
  %v711 = vadd.f32 %v641, %v177
  %v712 = vadd.f32 %v646, %v182
  %v713 = vadd.f32 %v651, %v187
  %v714 = vadd.f32 %v656, %v192
  %v715 = vadd.f32 %v661, %v197
  %v716 = vadd.f32 %v666, %v202
  %v717 = vadd.f32 %v671, %v207
  %v718 = vadd.f32 %v676, %v212
  %v719 = vadd.f32 %v681, %v217
  %v720 = vadd.f32 %v686, %v222
  %v721 = vadd.f32 %v691, %v227
  %v722 = vadd.f32 %v696, %v232
  %v723 = vadd.f32 %v701, %v237
  %v724 = vadd.f32 %v706, %v242
  %v725 = vtanh.pop %v709
  %v726 = vtanh.pop %v710
  %v727 = vtanh.pop %v711
  %v728 = vtanh.pop %v712
  %v729 = vtanh.pop %v713
  %v730 = vtanh.pop %v714
  %v731 = vtanh.pop %v715
  %v732 = vtanh.pop %v716
  %v733 = vtanh.pop %v717
  %v734 = vtanh.pop %v718
  %v735 = vtanh.pop %v719
  %v736 = vtanh.pop %v720
  %v737 = vtanh.pop %v721
  %v738 = vtanh.pop %v722
  %v739 = vtanh.pop %v723
  %v740 = vtanh.pop %v724
  %v741 = vmul.f32 %v725, 0.5
  %v742 = vmul.f32 %v726, 0.5
  %v743 = vmul.f32 %v727, 0.5
  %v744 = vmul.f32 %v728, 0.5
  %v745 = vmul.f32 %v729, 0.5
  %v746 = vmul.f32 %v730, 0.5
  %v747 = vmul.f32 %v731, 0.5
  %v748 = vmul.f32 %v732, 0.5
  %v749 = vmul.f32 %v733, 0.5
  %v750 = vmul.f32 %v734, 0.5
  %v751 = vmul.f32 %v735, 0.5
  %v752 = vmul.f32 %v736, 0.5
  %v753 = vadd.f32 %v741, 0.5
  %v754 = vadd.f32 %v742, 0.5
  %v755 = vadd.f32 %v743, 0.5
  %v756 = vadd.f32 %v744, 0.5
  %v757 = vadd.f32 %v745, 0.5
  %v758 = vadd.f32 %v746, 0.5
  %v759 = vadd.f32 %v747, 0.5
  %v760 = vadd.f32 %v748, 0.5
  %v761 = vadd.f32 %v749, 0.5
  %v762 = vadd.f32 %v750, 0.5
  %v763 = vadd.f32 %v751, 0.5
  %v764 = vadd.f32 %v752, 0.5
  %v765 = vmul.f32 %v757, %v531
  %v766 = vmul.f32 %v758, %v532
  %v767 = vmul.f32 %v759, %v533
  %v768 = vmul.f32 %v760, %v534
  %v769 = vmul.f32 %v753, %v737
  %v770 = vmul.f32 %v754, %v738
  %v771 = vmul.f32 %v755, %v739
  %v772 = vmul.f32 %v756, %v740
  %v773 = vadd.f32 %v765, %v769
  %v774 = vadd.f32 %v766, %v770
  %v775 = vadd.f32 %v767, %v771
  %v776 = vadd.f32 %v768, %v772
  %v777 = vtanh.pop %v773
  %v778 = vtanh.pop %v774
  %v779 = vtanh.pop %v775
  %v780 = vtanh.pop %v776
  %v781 = vmul.f32 %v761, %v777
  %v782 = vmul.f32 %v762, %v778
  %v783 = vmul.f32 %v763, %v779
  %v784 = vmul.f32 %v764, %v780
  %v785 = vld [vmem:[%s0 + $0x2] sm:$0x1]
  %v786 = vlaneseq
  %v787 = vshrl.u32 %v786, 7
  %v788 = vsub.s32 0, %v787
  %v789 = vrot.slane %v785, %v788
  %v790 = vmul.f32 %v789, %v71
  %v791 = vmul.f32 %v789, %v76
  %v792 = vmul.f32 %v789, %v81
  %v793 = vmul.f32 %v789, %v86
  %v794 = vmul.f32 %v789, %v91
  %v795 = vmul.f32 %v789, %v96
  %v796 = vmul.f32 %v789, %v101
  %v797 = vmul.f32 %v789, %v106
  %v798 = vmul.f32 %v789, %v111
  %v799 = vmul.f32 %v789, %v116
  %v800 = vmul.f32 %v789, %v121
  %v801 = vmul.f32 %v789, %v126
  %v802 = vmul.f32 %v789, %v131
  %v803 = vmul.f32 %v789, %v136
  %v804 = vmul.f32 %v789, %v141
  %v805 = vmul.f32 %v789, %v146
  %806 = vmatprep.subr.mxu0 0.0
  %807 = vmatpush1.msra.mxu0 %v781
  %808 = vmatprep.subr.mxu0 0.0
  %809 = vmatpush1.msra.mxu0 %v782
  %810 = vmatprep.subr.mxu0 0.0
  %811 = vmatpush1.msra.mxu0 %v783
  %812 = vmatprep.subr.mxu0 0.0
  %813 = vmatpush1.msra.mxu0 %v784
  %814 = vmatprep.subr.mxu0 0.0
  %815 = vmatpush1.msra.mxu0 0.0
  %816 = vmatprep.subr.mxu0 0.0
  %817 = vmatpush1.msra.mxu0 0.0
  %818 = vmatprep.subr.mxu0 0.0
  %819 = vmatpush1.msra.mxu0 0.0
  %820 = vmatprep.subr.mxu0 0.0
  %821 = vmatpush1.msra.mxu0 0.0
  %822 = vmatprep.subr.mxu0 0.0
  %823 = vmatpush1.msra.mxu0 0.0
  %824 = vmatprep.subr.mxu0 0.0
  %825 = vmatpush1.msra.mxu0 0.0
  %826 = vmatprep.subr.mxu0 0.0
  %827 = vmatpush1.msra.mxu0 0.0
  %828 = vmatprep.subr.mxu0 0.0
  %829 = vmatpush1.msra.mxu0 0.0
  %830 = vmatprep.subr.mxu0 0.0
  %831 = vmatpush1.msra.mxu0 0.0
  %832 = vmatprep.subr.mxu0 0.0
  %833 = vmatpush1.msra.mxu0 0.0
  %834 = vmatprep.subr.mxu0 0.0
  %835 = vmatpush1.msra.mxu0 0.0
  %836 = vmatprep.subr.mxu0 0.0
  %837 = vmatpush1.msra.mxu0 0.0
  %838 = vmatprep.subr.mxu0 0.0
  %839 = vmatpush1.msra.mxu0 0.0
  %840 = vmatprep.subr.mxu0 0.0
  %841 = vmatpush1.msra.mxu0 0.0
  %842 = vmatprep.subr.mxu0 0.0
  %843 = vmatpush1.msra.mxu0 0.0
  %844 = vmatprep.subr.mxu0 0.0
  %845 = vmatpush1.msra.mxu0 0.0
  %846 = vmatprep.subr.mxu0 0.0
  %847 = vmatpush1.msra.mxu0 0.0
  %848 = vmatprep.subr.mxu0 0.0
  %849 = vmatpush1.msra.mxu0 0.0
  %850 = vmatprep.subr.mxu0 0.0
  %851 = vmatpush1.msra.mxu0 0.0
  %852 = vmatprep.subr.mxu0 0.0
  %853 = vmatpush1.msra.mxu0 0.0
  %854 = vmatprep.subr.mxu0 0.0
  %855 = vmatpush1.msra.mxu0 0.0
  %856 = vmatprep.subr.mxu0 0.0
  %857 = vmatpush1.msra.mxu0 0.0
  %858 = vmatprep.subr.mxu0 0.0
  %859 = vmatpush1.msra.mxu0 0.0
  %860 = vmatprep.subr.mxu0 0.0
  %861 = vmatpush1.msra.mxu0 0.0
  %862 = vmatprep.subr.mxu0 0.0
  %863 = vmatpush1.msra.mxu0 0.0
  %864 = vmatprep.subr.mxu0 0.0
  %865 = vmatpush1.msra.mxu0 0.0
  %866 = vmatprep.subr.mxu0 0.0
  %867 = vmatpush1.msra.mxu0 0.0
  %868 = vmatprep.subr.mxu0 0.0
  %869 = vmatpush1.msra.mxu0 0.0
  %870 = vmatprep.mubr.f32.mxu0 0.0
  %871 = vmatmul.mubr.f32.gmra.mrb[0].mxu0 %v275
  %v872 = vpop.f32.mrb[0].mxu0
  %v873 = vadd.f32 %v790, %v872
  %v874 = vpop.f32.mrb[0].mxu0
  %875 = vmatprep.mubr.f32.mxu0 0.0
  %876 = vmatmul.mubr.f32.gmra.mrb[0].mxu0 %v278
  %v877 = vpop.f32.mrb[0].mxu0
  %v878 = vadd.f32 %v791, %v877
  %v879 = vpop.f32.mrb[0].mxu0
  %880 = vmatprep.mubr.f32.mxu0 0.0
  %881 = vmatmul.mubr.f32.gmra.mrb[0].mxu0 %v281
  %v882 = vpop.f32.mrb[0].mxu0
  %v883 = vadd.f32 %v792, %v882
  %v884 = vpop.f32.mrb[0].mxu0
  %885 = vmatprep.mubr.f32.mxu0 0.0
  %886 = vmatmul.mubr.f32.gmra.mrb[0].mxu0 %v284
  %v887 = vpop.f32.mrb[0].mxu0
  %v888 = vadd.f32 %v793, %v887
  %v889 = vpop.f32.mrb[0].mxu0
  %890 = vmatprep.mubr.f32.mxu0 0.0
  %891 = vmatmul.mubr.f32.gmra.mrb[0].mxu0 %v287
  %v892 = vpop.f32.mrb[0].mxu0
  %v893 = vadd.f32 %v794, %v892
  %v894 = vpop.f32.mrb[0].mxu0
  %895 = vmatprep.mubr.f32.mxu0 0.0
  %896 = vmatmul.mubr.f32.gmra.mrb[0].mxu0 %v290
  %v897 = vpop.f32.mrb[0].mxu0
  %v898 = vadd.f32 %v795, %v897
  %v899 = vpop.f32.mrb[0].mxu0
  %900 = vmatprep.mubr.f32.mxu0 0.0
  %901 = vmatmul.mubr.f32.gmra.mrb[0].mxu0 %v293
  %v902 = vpop.f32.mrb[0].mxu0
  %v903 = vadd.f32 %v796, %v902
  %v904 = vpop.f32.mrb[0].mxu0
  %905 = vmatprep.mubr.f32.mxu0 0.0
  %906 = vmatmul.mubr.f32.gmra.mrb[0].mxu0 %v296
  %v907 = vpop.f32.mrb[0].mxu0
  %v908 = vadd.f32 %v797, %v907
  %v909 = vpop.f32.mrb[0].mxu0
  %910 = vmatprep.mubr.f32.mxu0 0.0
  %911 = vmatmul.mubr.f32.gmra.mrb[0].mxu0 %v299
  %v912 = vpop.f32.mrb[0].mxu0
  %v913 = vadd.f32 %v798, %v912
  %v914 = vpop.f32.mrb[0].mxu0
  %915 = vmatprep.mubr.f32.mxu0 0.0
  %916 = vmatmul.mubr.f32.gmra.mrb[0].mxu0 %v302
  %v917 = vpop.f32.mrb[0].mxu0
  %v918 = vadd.f32 %v799, %v917
  %v919 = vpop.f32.mrb[0].mxu0
  %920 = vmatprep.mubr.f32.mxu0 0.0
  %921 = vmatmul.mubr.f32.gmra.mrb[0].mxu0 %v305
  %v922 = vpop.f32.mrb[0].mxu0
  %v923 = vadd.f32 %v800, %v922
  %v924 = vpop.f32.mrb[0].mxu0
  %925 = vmatprep.mubr.f32.mxu0 0.0
  %926 = vmatmul.mubr.f32.gmra.mrb[0].mxu0 %v308
  %v927 = vpop.f32.mrb[0].mxu0
  %v928 = vadd.f32 %v801, %v927
  %v929 = vpop.f32.mrb[0].mxu0
  %930 = vmatprep.mubr.f32.mxu0 0.0
  %931 = vmatmul.mubr.f32.gmra.mrb[0].mxu0 %v311
  %v932 = vpop.f32.mrb[0].mxu0
  %v933 = vadd.f32 %v802, %v932
  %v934 = vpop.f32.mrb[0].mxu0
  %935 = vmatprep.mubr.f32.mxu0 0.0
  %936 = vmatmul.mubr.f32.gmra.mrb[0].mxu0 %v314
  %v937 = vpop.f32.mrb[0].mxu0
  %v938 = vadd.f32 %v803, %v937
  %v939 = vpop.f32.mrb[0].mxu0
  %940 = vmatprep.mubr.f32.mxu0 0.0
  %941 = vmatmul.mubr.f32.gmra.mrb[0].mxu0 %v317
  %v942 = vpop.f32.mrb[0].mxu0
  %v943 = vadd.f32 %v804, %v942
  %v944 = vpop.f32.mrb[0].mxu0
  %945 = vmatprep.mubr.f32.mxu0 0.0
  %946 = vmatmul.mubr.f32.gmra.mrb[0].mxu0 %v320
  %v947 = vpop.f32.mrb[0].mxu0
  %v948 = vadd.f32 %v805, %v947
  %v949 = vpop.f32.mrb[0].mxu0
  %950 = vdwg.mxu0
  %v951 = vadd.f32 %v873, %v167
  %v952 = vadd.f32 %v878, %v172
  %v953 = vadd.f32 %v883, %v177
  %v954 = vadd.f32 %v888, %v182
  %v955 = vadd.f32 %v893, %v187
  %v956 = vadd.f32 %v898, %v192
  %v957 = vadd.f32 %v903, %v197
  %v958 = vadd.f32 %v908, %v202
  %v959 = vadd.f32 %v913, %v207
  %v960 = vadd.f32 %v918, %v212
  %v961 = vadd.f32 %v923, %v217
  %v962 = vadd.f32 %v928, %v222
  %v963 = vadd.f32 %v933, %v227
  %v964 = vadd.f32 %v938, %v232
  %v965 = vadd.f32 %v943, %v237
  %v966 = vadd.f32 %v948, %v242
  %v967 = vtanh.pop %v951
  %v968 = vtanh.pop %v952
  %v969 = vtanh.pop %v953
  %v970 = vtanh.pop %v954
  %v971 = vtanh.pop %v955
  %v972 = vtanh.pop %v956
  %v973 = vtanh.pop %v957
  %v974 = vtanh.pop %v958
  %v975 = vtanh.pop %v959
  %v976 = vtanh.pop %v960
  %v977 = vtanh.pop %v961
  %v978 = vtanh.pop %v962
  %v979 = vtanh.pop %v963
  %v980 = vtanh.pop %v964
  %v981 = vtanh.pop %v965
  %v982 = vtanh.pop %v966
  %v983 = vmul.f32 %v967, 0.5
  %v984 = vmul.f32 %v968, 0.5
  %v985 = vmul.f32 %v969, 0.5
  %v986 = vmul.f32 %v970, 0.5
  %v987 = vmul.f32 %v971, 0.5
  %v988 = vmul.f32 %v972, 0.5
  %v989 = vmul.f32 %v973, 0.5
  %v990 = vmul.f32 %v974, 0.5
  %v991 = vmul.f32 %v975, 0.5
  %v992 = vmul.f32 %v976, 0.5
  %v993 = vmul.f32 %v977, 0.5
  %v994 = vmul.f32 %v978, 0.5
  %v995 = vadd.f32 %v983, 0.5
  %v996 = vadd.f32 %v984, 0.5
  %v997 = vadd.f32 %v985, 0.5
  %v998 = vadd.f32 %v986, 0.5
  %v999 = vadd.f32 %v987, 0.5
  %v1000 = vadd.f32 %v988, 0.5
  %v1001 = vadd.f32 %v989, 0.5
  %v1002 = vadd.f32 %v990, 0.5
  %v1003 = vadd.f32 %v991, 0.5
  %v1004 = vadd.f32 %v992, 0.5
  %v1005 = vadd.f32 %v993, 0.5
  %v1006 = vadd.f32 %v994, 0.5
  %v1007 = vmul.f32 %v999, %v773
  %v1008 = vmul.f32 %v1000, %v774
  %v1009 = vmul.f32 %v1001, %v775
  %v1010 = vmul.f32 %v1002, %v776
  %v1011 = vmul.f32 %v995, %v979
  %v1012 = vmul.f32 %v996, %v980
  %v1013 = vmul.f32 %v997, %v981
  %v1014 = vmul.f32 %v998, %v982
  %v1015 = vadd.f32 %v1007, %v1011
  %v1016 = vadd.f32 %v1008, %v1012
  %v1017 = vadd.f32 %v1009, %v1013
  %v1018 = vadd.f32 %v1010, %v1014
  %v1019 = vtanh.pop %v1015
  %v1020 = vtanh.pop %v1016
  %v1021 = vtanh.pop %v1017
  %v1022 = vtanh.pop %v1018
  %v1023 = vmul.f32 %v1003, %v1019
  %v1024 = vmul.f32 %v1004, %v1020
  %v1025 = vmul.f32 %v1005, %v1021
  %v1026 = vmul.f32 %v1006, %v1022
  %v1027 = vld [vmem:[%s0 + $0x3] sm:$0x1]
  %v1028 = vlaneseq
  %v1029 = vshrl.u32 %v1028, 7
  %v1030 = vsub.s32 0, %v1029
  %v1031 = vrot.slane %v1027, %v1030
  %v1032 = vmul.f32 %v1031, %v71
  %v1033 = vmul.f32 %v1031, %v76
  %v1034 = vmul.f32 %v1031, %v81
  %v1035 = vmul.f32 %v1031, %v86
  %v1036 = vmul.f32 %v1031, %v91
  %v1037 = vmul.f32 %v1031, %v96
  %v1038 = vmul.f32 %v1031, %v101
  %v1039 = vmul.f32 %v1031, %v106
  %v1040 = vmul.f32 %v1031, %v111
  %v1041 = vmul.f32 %v1031, %v116
  %v1042 = vmul.f32 %v1031, %v121
  %v1043 = vmul.f32 %v1031, %v126
  %v1044 = vmul.f32 %v1031, %v131
  %v1045 = vmul.f32 %v1031, %v136
  %v1046 = vmul.f32 %v1031, %v141
  %v1047 = vmul.f32 %v1031, %v146
  %1048 = vmatprep.subr.mxu0 0.0
  %1049 = vmatpush1.msra.mxu0 %v1023
  %1050 = vmatprep.subr.mxu0 0.0
  %1051 = vmatpush1.msra.mxu0 %v1024
  %1052 = vmatprep.subr.mxu0 0.0
  %1053 = vmatpush1.msra.mxu0 %v1025
  %1054 = vmatprep.subr.mxu0 0.0
  %1055 = vmatpush1.msra.mxu0 %v1026
  %1056 = vmatprep.subr.mxu0 0.0
  %1057 = vmatpush1.msra.mxu0 0.0
  %1058 = vmatprep.subr.mxu0 0.0
  %1059 = vmatpush1.msra.mxu0 0.0
  %1060 = vmatprep.subr.mxu0 0.0
  %1061 = vmatpush1.msra.mxu0 0.0
  %1062 = vmatprep.subr.mxu0 0.0
  %1063 = vmatpush1.msra.mxu0 0.0
  %1064 = vmatprep.subr.mxu0 0.0
  %1065 = vmatpush1.msra.mxu0 0.0
  %1066 = vmatprep.subr.mxu0 0.0
  %1067 = vmatpush1.msra.mxu0 0.0
  %1068 = vmatprep.subr.mxu0 0.0
  %1069 = vmatpush1.msra.mxu0 0.0
  %1070 = vmatprep.subr.mxu0 0.0
  %1071 = vmatpush1.msra.mxu0 0.0
  %1072 = vmatprep.subr.mxu0 0.0
  %1073 = vmatpush1.msra.mxu0 0.0
  %1074 = vmatprep.subr.mxu0 0.0
  %1075 = vmatpush1.msra.mxu0 0.0
  %1076 = vmatprep.subr.mxu0 0.0
  %1077 = vmatpush1.msra.mxu0 0.0
  %1078 = vmatprep.subr.mxu0 0.0
  %1079 = vmatpush1.msra.mxu0 0.0
  %1080 = vmatprep.subr.mxu0 0.0
  %1081 = vmatpush1.msra.mxu0 0.0
  %1082 = vmatprep.subr.mxu0 0.0
  %1083 = vmatpush1.msra.mxu0 0.0
  %1084 = vmatprep.subr.mxu0 0.0
  %1085 = vmatpush1.msra.mxu0 0.0
  %1086 = vmatprep.subr.mxu0 0.0
  %1087 = vmatpush1.msra.mxu0 0.0
  %1088 = vmatprep.subr.mxu0 0.0
  %1089 = vmatpush1.msra.mxu0 0.0
  %1090 = vmatprep.subr.mxu0 0.0
  %1091 = vmatpush1.msra.mxu0 0.0
  %1092 = vmatprep.subr.mxu0 0.0
  %1093 = vmatpush1.msra.mxu0 0.0
  %1094 = vmatprep.subr.mxu0 0.0
  %1095 = vmatpush1.msra.mxu0 0.0
  %1096 = vmatprep.subr.mxu0 0.0
  %1097 = vmatpush1.msra.mxu0 0.0
  %1098 = vmatprep.subr.mxu0 0.0
  %1099 = vmatpush1.msra.mxu0 0.0
  %1100 = vmatprep.subr.mxu0 0.0
  %1101 = vmatpush1.msra.mxu0 0.0
  %1102 = vmatprep.subr.mxu0 0.0
  %1103 = vmatpush1.msra.mxu0 0.0
  %1104 = vmatprep.subr.mxu0 0.0
  %1105 = vmatpush1.msra.mxu0 0.0
  %1106 = vmatprep.subr.mxu0 0.0
  %1107 = vmatpush1.msra.mxu0 0.0
  %1108 = vmatprep.subr.mxu0 0.0
  %1109 = vmatpush1.msra.mxu0 0.0
  %1110 = vmatprep.subr.mxu0 0.0
  %1111 = vmatpush1.msra.mxu0 0.0
  %1112 = vmatprep.mubr.f32.mxu0 0.0
  %1113 = vmatmul.mubr.f32.gmra.mrb[0].mxu0 %v275
  %v1114 = vpop.f32.mrb[0].mxu0
  %v1115 = vadd.f32 %v1032, %v1114
  %v1116 = vpop.f32.mrb[0].mxu0
  %1117 = vmatprep.mubr.f32.mxu0 0.0
  %1118 = vmatmul.mubr.f32.gmra.mrb[0].mxu0 %v278
  %v1119 = vpop.f32.mrb[0].mxu0
  %v1120 = vadd.f32 %v1033, %v1119
  %v1121 = vpop.f32.mrb[0].mxu0
  %1122 = vmatprep.mubr.f32.mxu0 0.0
  %1123 = vmatmul.mubr.f32.gmra.mrb[0].mxu0 %v281
  %v1124 = vpop.f32.mrb[0].mxu0
  %v1125 = vadd.f32 %v1034, %v1124
  %v1126 = vpop.f32.mrb[0].mxu0
  %1127 = vmatprep.mubr.f32.mxu0 0.0
  %1128 = vmatmul.mubr.f32.gmra.mrb[0].mxu0 %v284
  %v1129 = vpop.f32.mrb[0].mxu0
  %v1130 = vadd.f32 %v1035, %v1129
  %v1131 = vpop.f32.mrb[0].mxu0
  %1132 = vmatprep.mubr.f32.mxu0 0.0
  %1133 = vmatmul.mubr.f32.gmra.mrb[0].mxu0 %v287
  %v1134 = vpop.f32.mrb[0].mxu0
  %v1135 = vadd.f32 %v1036, %v1134
  %v1136 = vpop.f32.mrb[0].mxu0
  %1137 = vmatprep.mubr.f32.mxu0 0.0
  %1138 = vmatmul.mubr.f32.gmra.mrb[0].mxu0 %v290
  %v1139 = vpop.f32.mrb[0].mxu0
  %v1140 = vadd.f32 %v1037, %v1139
  %v1141 = vpop.f32.mrb[0].mxu0
  %1142 = vmatprep.mubr.f32.mxu0 0.0
  %1143 = vmatmul.mubr.f32.gmra.mrb[0].mxu0 %v293
  %v1144 = vpop.f32.mrb[0].mxu0
  %v1145 = vadd.f32 %v1038, %v1144
  %v1146 = vpop.f32.mrb[0].mxu0
  %1147 = vmatprep.mubr.f32.mxu0 0.0
  %1148 = vmatmul.mubr.f32.gmra.mrb[0].mxu0 %v296
  %v1149 = vpop.f32.mrb[0].mxu0
  %v1150 = vadd.f32 %v1039, %v1149
  %v1151 = vpop.f32.mrb[0].mxu0
  %1152 = vmatprep.mubr.f32.mxu0 0.0
  %1153 = vmatmul.mubr.f32.gmra.mrb[0].mxu0 %v299
  %v1154 = vpop.f32.mrb[0].mxu0
  %v1155 = vadd.f32 %v1040, %v1154
  %v1156 = vpop.f32.mrb[0].mxu0
  %1157 = vmatprep.mubr.f32.mxu0 0.0
  %1158 = vmatmul.mubr.f32.gmra.mrb[0].mxu0 %v302
  %v1159 = vpop.f32.mrb[0].mxu0
  %v1160 = vadd.f32 %v1041, %v1159
  %v1161 = vpop.f32.mrb[0].mxu0
  %1162 = vmatprep.mubr.f32.mxu0 0.0
  %1163 = vmatmul.mubr.f32.gmra.mrb[0].mxu0 %v305
  %v1164 = vpop.f32.mrb[0].mxu0
  %v1165 = vadd.f32 %v1042, %v1164
  %v1166 = vpop.f32.mrb[0].mxu0
  %1167 = vmatprep.mubr.f32.mxu0 0.0
  %1168 = vmatmul.mubr.f32.gmra.mrb[0].mxu0 %v308
  %v1169 = vpop.f32.mrb[0].mxu0
  %v1170 = vadd.f32 %v1043, %v1169
  %v1171 = vpop.f32.mrb[0].mxu0
  %1172 = vmatprep.mubr.f32.mxu0 0.0
  %1173 = vmatmul.mubr.f32.gmra.mrb[0].mxu0 %v311
  %v1174 = vpop.f32.mrb[0].mxu0
  %v1175 = vadd.f32 %v1044, %v1174
  %v1176 = vpop.f32.mrb[0].mxu0
  %1177 = vmatprep.mubr.f32.mxu0 0.0
  %1178 = vmatmul.mubr.f32.gmra.mrb[0].mxu0 %v314
  %v1179 = vpop.f32.mrb[0].mxu0
  %v1180 = vadd.f32 %v1045, %v1179
  %v1181 = vpop.f32.mrb[0].mxu0
  %1182 = vmatprep.mubr.f32.mxu0 0.0
  %1183 = vmatmul.mubr.f32.gmra.mrb[0].mxu0 %v317
  %v1184 = vpop.f32.mrb[0].mxu0
  %v1185 = vadd.f32 %v1046, %v1184
  %v1186 = vpop.f32.mrb[0].mxu0
  %1187 = vmatprep.mubr.f32.mxu0 0.0
  %1188 = vmatmul.mubr.f32.gmra.mrb[0].mxu0 %v320
  %v1189 = vpop.f32.mrb[0].mxu0
  %v1190 = vadd.f32 %v1047, %v1189
  %v1191 = vpop.f32.mrb[0].mxu0
  %1192 = vdwg.mxu0
  %v1193 = vadd.f32 %v1115, %v167
  %v1194 = vadd.f32 %v1120, %v172
  %v1195 = vadd.f32 %v1125, %v177
  %v1196 = vadd.f32 %v1130, %v182
  %v1197 = vadd.f32 %v1135, %v187
  %v1198 = vadd.f32 %v1140, %v192
  %v1199 = vadd.f32 %v1145, %v197
  %v1200 = vadd.f32 %v1150, %v202
  %v1201 = vadd.f32 %v1155, %v207
  %v1202 = vadd.f32 %v1160, %v212
  %v1203 = vadd.f32 %v1165, %v217
  %v1204 = vadd.f32 %v1170, %v222
  %v1205 = vadd.f32 %v1175, %v227
  %v1206 = vadd.f32 %v1180, %v232
  %v1207 = vadd.f32 %v1185, %v237
  %v1208 = vadd.f32 %v1190, %v242
  %v1209 = vtanh.pop %v1193
  %v1210 = vtanh.pop %v1194
  %v1211 = vtanh.pop %v1195
  %v1212 = vtanh.pop %v1196
  %v1213 = vtanh.pop %v1197
  %v1214 = vtanh.pop %v1198
  %v1215 = vtanh.pop %v1199
  %v1216 = vtanh.pop %v1200
  %v1217 = vtanh.pop %v1201
  %v1218 = vtanh.pop %v1202
  %v1219 = vtanh.pop %v1203
  %v1220 = vtanh.pop %v1204
  %v1221 = vtanh.pop %v1205
  %v1222 = vtanh.pop %v1206
  %v1223 = vtanh.pop %v1207
  %v1224 = vtanh.pop %v1208
  %v1225 = vmul.f32 %v1209, 0.5
  %v1226 = vmul.f32 %v1210, 0.5
  %v1227 = vmul.f32 %v1211, 0.5
  %v1228 = vmul.f32 %v1212, 0.5
  %v1229 = vmul.f32 %v1213, 0.5
  %v1230 = vmul.f32 %v1214, 0.5
  %v1231 = vmul.f32 %v1215, 0.5
  %v1232 = vmul.f32 %v1216, 0.5
  %v1233 = vmul.f32 %v1217, 0.5
  %v1234 = vmul.f32 %v1218, 0.5
  %v1235 = vmul.f32 %v1219, 0.5
  %v1236 = vmul.f32 %v1220, 0.5
  %v1237 = vadd.f32 %v1225, 0.5
  %v1238 = vadd.f32 %v1226, 0.5
  %v1239 = vadd.f32 %v1227, 0.5
  %v1240 = vadd.f32 %v1228, 0.5
  %v1241 = vadd.f32 %v1229, 0.5
  %v1242 = vadd.f32 %v1230, 0.5
  %v1243 = vadd.f32 %v1231, 0.5
  %v1244 = vadd.f32 %v1232, 0.5
  %v1245 = vadd.f32 %v1233, 0.5
  %v1246 = vadd.f32 %v1234, 0.5
  %v1247 = vadd.f32 %v1235, 0.5
  %v1248 = vadd.f32 %v1236, 0.5
  %v1249 = vmul.f32 %v1241, %v1015
  %v1250 = vmul.f32 %v1242, %v1016
  %v1251 = vmul.f32 %v1243, %v1017
  %v1252 = vmul.f32 %v1244, %v1018
  %v1253 = vmul.f32 %v1237, %v1221
  %v1254 = vmul.f32 %v1238, %v1222
  %v1255 = vmul.f32 %v1239, %v1223
  %v1256 = vmul.f32 %v1240, %v1224
  %v1257 = vadd.f32 %v1249, %v1253
  %v1258 = vadd.f32 %v1250, %v1254
  %v1259 = vadd.f32 %v1251, %v1255
  %v1260 = vadd.f32 %v1252, %v1256
  %v1261 = vtanh.pop %v1257
  %v1262 = vtanh.pop %v1258
  %v1263 = vtanh.pop %v1259
  %v1264 = vtanh.pop %v1260
  %v1265 = vmul.f32 %v1245, %v1261
  %v1266 = vmul.f32 %v1246, %v1262
  %v1267 = vmul.f32 %v1247, %v1263
  %v1268 = vmul.f32 %v1248, %v1264
  %v1269 = vld [vmem:[%s0 + $0x4] sm:$0x1]
  %v1270 = vlaneseq
  %v1271 = vshrl.u32 %v1270, 7
  %v1272 = vsub.s32 0, %v1271
  %v1273 = vrot.slane %v1269, %v1272
  %v1274 = vmul.f32 %v1273, %v71
  %v1275 = vmul.f32 %v1273, %v76
  %v1276 = vmul.f32 %v1273, %v81
  %v1277 = vmul.f32 %v1273, %v86
  %v1278 = vmul.f32 %v1273, %v91
  %v1279 = vmul.f32 %v1273, %v96
  %v1280 = vmul.f32 %v1273, %v101
  %v1281 = vmul.f32 %v1273, %v106
  %v1282 = vmul.f32 %v1273, %v111
  %v1283 = vmul.f32 %v1273, %v116
  %v1284 = vmul.f32 %v1273, %v121
  %v1285 = vmul.f32 %v1273, %v126
  %v1286 = vmul.f32 %v1273, %v131
  %v1287 = vmul.f32 %v1273, %v136
  %v1288 = vmul.f32 %v1273, %v141
  %v1289 = vmul.f32 %v1273, %v146
  %1290 = vmatprep.subr.mxu0 0.0
  %1291 = vmatpush1.msra.mxu0 %v1265
  %1292 = vmatprep.subr.mxu0 0.0
  %1293 = vmatpush1.msra.mxu0 %v1266
  %1294 = vmatprep.subr.mxu0 0.0
  %1295 = vmatpush1.msra.mxu0 %v1267
  %1296 = vmatprep.subr.mxu0 0.0
  %1297 = vmatpush1.msra.mxu0 %v1268
  %1298 = vmatprep.subr.mxu0 0.0
  %1299 = vmatpush1.msra.mxu0 0.0
  %1300 = vmatprep.subr.mxu0 0.0
  %1301 = vmatpush1.msra.mxu0 0.0
  %1302 = vmatprep.subr.mxu0 0.0
  %1303 = vmatpush1.msra.mxu0 0.0
  %1304 = vmatprep.subr.mxu0 0.0
  %1305 = vmatpush1.msra.mxu0 0.0
  %1306 = vmatprep.subr.mxu0 0.0
  %1307 = vmatpush1.msra.mxu0 0.0
  %1308 = vmatprep.subr.mxu0 0.0
  %1309 = vmatpush1.msra.mxu0 0.0
  %1310 = vmatprep.subr.mxu0 0.0
  %1311 = vmatpush1.msra.mxu0 0.0
  %1312 = vmatprep.subr.mxu0 0.0
  %1313 = vmatpush1.msra.mxu0 0.0
  %1314 = vmatprep.subr.mxu0 0.0
  %1315 = vmatpush1.msra.mxu0 0.0
  %1316 = vmatprep.subr.mxu0 0.0
  %1317 = vmatpush1.msra.mxu0 0.0
  %1318 = vmatprep.subr.mxu0 0.0
  %1319 = vmatpush1.msra.mxu0 0.0
  %1320 = vmatprep.subr.mxu0 0.0
  %1321 = vmatpush1.msra.mxu0 0.0
  %1322 = vmatprep.subr.mxu0 0.0
  %1323 = vmatpush1.msra.mxu0 0.0
  %1324 = vmatprep.subr.mxu0 0.0
  %1325 = vmatpush1.msra.mxu0 0.0
  %1326 = vmatprep.subr.mxu0 0.0
  %1327 = vmatpush1.msra.mxu0 0.0
  %1328 = vmatprep.subr.mxu0 0.0
  %1329 = vmatpush1.msra.mxu0 0.0
  %1330 = vmatprep.subr.mxu0 0.0
  %1331 = vmatpush1.msra.mxu0 0.0
  %1332 = vmatprep.subr.mxu0 0.0
  %1333 = vmatpush1.msra.mxu0 0.0
  %1334 = vmatprep.subr.mxu0 0.0
  %1335 = vmatpush1.msra.mxu0 0.0
  %1336 = vmatprep.subr.mxu0 0.0
  %1337 = vmatpush1.msra.mxu0 0.0
  %1338 = vmatprep.subr.mxu0 0.0
  %1339 = vmatpush1.msra.mxu0 0.0
  %1340 = vmatprep.subr.mxu0 0.0
  %1341 = vmatpush1.msra.mxu0 0.0
  %1342 = vmatprep.subr.mxu0 0.0
  %1343 = vmatpush1.msra.mxu0 0.0
  %1344 = vmatprep.subr.mxu0 0.0
  %1345 = vmatpush1.msra.mxu0 0.0
  %1346 = vmatprep.subr.mxu0 0.0
  %1347 = vmatpush1.msra.mxu0 0.0
  %1348 = vmatprep.subr.mxu0 0.0
  %1349 = vmatpush1.msra.mxu0 0.0
  %1350 = vmatprep.subr.mxu0 0.0
  %1351 = vmatpush1.msra.mxu0 0.0
  %1352 = vmatprep.subr.mxu0 0.0
  %1353 = vmatpush1.msra.mxu0 0.0
  %1354 = vmatprep.mubr.f32.mxu0 0.0
  %1355 = vmatmul.mubr.f32.gmra.mrb[0].mxu0 %v275
  %v1356 = vpop.f32.mrb[0].mxu0
  %v1357 = vadd.f32 %v1274, %v1356
  %v1358 = vpop.f32.mrb[0].mxu0
  %1359 = vmatprep.mubr.f32.mxu0 0.0
  %1360 = vmatmul.mubr.f32.gmra.mrb[0].mxu0 %v278
  %v1361 = vpop.f32.mrb[0].mxu0
  %v1362 = vadd.f32 %v1275, %v1361
  %v1363 = vpop.f32.mrb[0].mxu0
  %1364 = vmatprep.mubr.f32.mxu0 0.0
  %1365 = vmatmul.mubr.f32.gmra.mrb[0].mxu0 %v281
  %v1366 = vpop.f32.mrb[0].mxu0
  %v1367 = vadd.f32 %v1276, %v1366
  %v1368 = vpop.f32.mrb[0].mxu0
  %1369 = vmatprep.mubr.f32.mxu0 0.0
  %1370 = vmatmul.mubr.f32.gmra.mrb[0].mxu0 %v284
  %v1371 = vpop.f32.mrb[0].mxu0
  %v1372 = vadd.f32 %v1277, %v1371
  %v1373 = vpop.f32.mrb[0].mxu0
  %1374 = vmatprep.mubr.f32.mxu0 0.0
  %1375 = vmatmul.mubr.f32.gmra.mrb[0].mxu0 %v287
  %v1376 = vpop.f32.mrb[0].mxu0
  %v1377 = vadd.f32 %v1278, %v1376
  %v1378 = vpop.f32.mrb[0].mxu0
  %1379 = vmatprep.mubr.f32.mxu0 0.0
  %1380 = vmatmul.mubr.f32.gmra.mrb[0].mxu0 %v290
  %v1381 = vpop.f32.mrb[0].mxu0
  %v1382 = vadd.f32 %v1279, %v1381
  %v1383 = vpop.f32.mrb[0].mxu0
  %1384 = vmatprep.mubr.f32.mxu0 0.0
  %1385 = vmatmul.mubr.f32.gmra.mrb[0].mxu0 %v293
  %v1386 = vpop.f32.mrb[0].mxu0
  %v1387 = vadd.f32 %v1280, %v1386
  %v1388 = vpop.f32.mrb[0].mxu0
  %1389 = vmatprep.mubr.f32.mxu0 0.0
  %1390 = vmatmul.mubr.f32.gmra.mrb[0].mxu0 %v296
  %v1391 = vpop.f32.mrb[0].mxu0
  %v1392 = vadd.f32 %v1281, %v1391
  %v1393 = vpop.f32.mrb[0].mxu0
  %1394 = vmatprep.mubr.f32.mxu0 0.0
  %1395 = vmatmul.mubr.f32.gmra.mrb[0].mxu0 %v299
  %v1396 = vpop.f32.mrb[0].mxu0
  %v1397 = vadd.f32 %v1282, %v1396
  %v1398 = vpop.f32.mrb[0].mxu0
  %1399 = vmatprep.mubr.f32.mxu0 0.0
  %1400 = vmatmul.mubr.f32.gmra.mrb[0].mxu0 %v302
  %v1401 = vpop.f32.mrb[0].mxu0
  %v1402 = vadd.f32 %v1283, %v1401
  %v1403 = vpop.f32.mrb[0].mxu0
  %1404 = vmatprep.mubr.f32.mxu0 0.0
  %1405 = vmatmul.mubr.f32.gmra.mrb[0].mxu0 %v305
  %v1406 = vpop.f32.mrb[0].mxu0
  %v1407 = vadd.f32 %v1284, %v1406
  %v1408 = vpop.f32.mrb[0].mxu0
  %1409 = vmatprep.mubr.f32.mxu0 0.0
  %1410 = vmatmul.mubr.f32.gmra.mrb[0].mxu0 %v308
  %v1411 = vpop.f32.mrb[0].mxu0
  %v1412 = vadd.f32 %v1285, %v1411
  %v1413 = vpop.f32.mrb[0].mxu0
  %1414 = vmatprep.mubr.f32.mxu0 0.0
  %1415 = vmatmul.mubr.f32.gmra.mrb[0].mxu0 %v311
  %v1416 = vpop.f32.mrb[0].mxu0
  %v1417 = vadd.f32 %v1286, %v1416
  %v1418 = vpop.f32.mrb[0].mxu0
  %1419 = vmatprep.mubr.f32.mxu0 0.0
  %1420 = vmatmul.mubr.f32.gmra.mrb[0].mxu0 %v314
  %v1421 = vpop.f32.mrb[0].mxu0
  %v1422 = vadd.f32 %v1287, %v1421
  %v1423 = vpop.f32.mrb[0].mxu0
  %1424 = vmatprep.mubr.f32.mxu0 0.0
  %1425 = vmatmul.mubr.f32.gmra.mrb[0].mxu0 %v317
  %v1426 = vpop.f32.mrb[0].mxu0
  %v1427 = vadd.f32 %v1288, %v1426
  %v1428 = vpop.f32.mrb[0].mxu0
  %1429 = vmatprep.mubr.f32.mxu0 0.0
  %1430 = vmatmul.mubr.f32.gmra.mrb[0].mxu0 %v320
  %v1431 = vpop.f32.mrb[0].mxu0
  %v1432 = vadd.f32 %v1289, %v1431
  %v1433 = vpop.f32.mrb[0].mxu0
  %1434 = vdwg.mxu0
  %v1435 = vadd.f32 %v1357, %v167
  %v1436 = vadd.f32 %v1362, %v172
  %v1437 = vadd.f32 %v1367, %v177
  %v1438 = vadd.f32 %v1372, %v182
  %v1439 = vadd.f32 %v1377, %v187
  %v1440 = vadd.f32 %v1382, %v192
  %v1441 = vadd.f32 %v1387, %v197
  %v1442 = vadd.f32 %v1392, %v202
  %v1443 = vadd.f32 %v1397, %v207
  %v1444 = vadd.f32 %v1402, %v212
  %v1445 = vadd.f32 %v1407, %v217
  %v1446 = vadd.f32 %v1412, %v222
  %v1447 = vadd.f32 %v1417, %v227
  %v1448 = vadd.f32 %v1422, %v232
  %v1449 = vadd.f32 %v1427, %v237
  %v1450 = vadd.f32 %v1432, %v242
  %v1451 = vtanh.pop %v1435
  %v1452 = vtanh.pop %v1436
  %v1453 = vtanh.pop %v1437
  %v1454 = vtanh.pop %v1438
  %v1455 = vtanh.pop %v1439
  %v1456 = vtanh.pop %v1440
  %v1457 = vtanh.pop %v1441
  %v1458 = vtanh.pop %v1442
  %v1459 = vtanh.pop %v1443
  %v1460 = vtanh.pop %v1444
  %v1461 = vtanh.pop %v1445
  %v1462 = vtanh.pop %v1446
  %v1463 = vtanh.pop %v1447
  %v1464 = vtanh.pop %v1448
  %v1465 = vtanh.pop %v1449
  %v1466 = vtanh.pop %v1450
  %v1467 = vmul.f32 %v1451, 0.5
  %v1468 = vmul.f32 %v1452, 0.5
  %v1469 = vmul.f32 %v1453, 0.5
  %v1470 = vmul.f32 %v1454, 0.5
  %v1471 = vmul.f32 %v1455, 0.5
  %v1472 = vmul.f32 %v1456, 0.5
  %v1473 = vmul.f32 %v1457, 0.5
  %v1474 = vmul.f32 %v1458, 0.5
  %v1475 = vmul.f32 %v1459, 0.5
  %v1476 = vmul.f32 %v1460, 0.5
  %v1477 = vmul.f32 %v1461, 0.5
  %v1478 = vmul.f32 %v1462, 0.5
  %v1479 = vadd.f32 %v1467, 0.5
  %v1480 = vadd.f32 %v1468, 0.5
  %v1481 = vadd.f32 %v1469, 0.5
  %v1482 = vadd.f32 %v1470, 0.5
  %v1483 = vadd.f32 %v1471, 0.5
  %v1484 = vadd.f32 %v1472, 0.5
  %v1485 = vadd.f32 %v1473, 0.5
  %v1486 = vadd.f32 %v1474, 0.5
  %v1487 = vadd.f32 %v1475, 0.5
  %v1488 = vadd.f32 %v1476, 0.5
  %v1489 = vadd.f32 %v1477, 0.5
  %v1490 = vadd.f32 %v1478, 0.5
  %v1491 = vmul.f32 %v1483, %v1257
  %v1492 = vmul.f32 %v1484, %v1258
  %v1493 = vmul.f32 %v1485, %v1259
  %v1494 = vmul.f32 %v1486, %v1260
  %v1495 = vmul.f32 %v1479, %v1463
  %v1496 = vmul.f32 %v1480, %v1464
  %v1497 = vmul.f32 %v1481, %v1465
  %v1498 = vmul.f32 %v1482, %v1466
  %v1499 = vadd.f32 %v1491, %v1495
  %v1500 = vadd.f32 %v1492, %v1496
  %v1501 = vadd.f32 %v1493, %v1497
  %v1502 = vadd.f32 %v1494, %v1498
  %v1503 = vtanh.pop %v1499
  %v1504 = vtanh.pop %v1500
  %v1505 = vtanh.pop %v1501
  %v1506 = vtanh.pop %v1502
  %v1507 = vmul.f32 %v1487, %v1503
  %v1508 = vmul.f32 %v1488, %v1504
  %v1509 = vmul.f32 %v1489, %v1505
  %v1510 = vmul.f32 %v1490, %v1506
  %v1511 = vld [vmem:[%s0 + $0x5] sm:$0x1]
  %v1512 = vlaneseq
  %v1513 = vshrl.u32 %v1512, 7
  %v1514 = vsub.s32 0, %v1513
  %v1515 = vrot.slane %v1511, %v1514
  %v1516 = vmul.f32 %v1515, %v71
  %v1517 = vmul.f32 %v1515, %v76
  %v1518 = vmul.f32 %v1515, %v81
  %v1519 = vmul.f32 %v1515, %v86
  %v1520 = vmul.f32 %v1515, %v91
  %v1521 = vmul.f32 %v1515, %v96
  %v1522 = vmul.f32 %v1515, %v101
  %v1523 = vmul.f32 %v1515, %v106
  %v1524 = vmul.f32 %v1515, %v111
  %v1525 = vmul.f32 %v1515, %v116
  %v1526 = vmul.f32 %v1515, %v121
  %v1527 = vmul.f32 %v1515, %v126
  %v1528 = vmul.f32 %v1515, %v131
  %v1529 = vmul.f32 %v1515, %v136
  %v1530 = vmul.f32 %v1515, %v141
  %v1531 = vmul.f32 %v1515, %v146
  %1532 = vmatprep.subr.mxu0 0.0
  %1533 = vmatpush1.msra.mxu0 %v1507
  %1534 = vmatprep.subr.mxu0 0.0
  %1535 = vmatpush1.msra.mxu0 %v1508
  %1536 = vmatprep.subr.mxu0 0.0
  %1537 = vmatpush1.msra.mxu0 %v1509
  %1538 = vmatprep.subr.mxu0 0.0
  %1539 = vmatpush1.msra.mxu0 %v1510
  %1540 = vmatprep.subr.mxu0 0.0
  %1541 = vmatpush1.msra.mxu0 0.0
  %1542 = vmatprep.subr.mxu0 0.0
  %1543 = vmatpush1.msra.mxu0 0.0
  %1544 = vmatprep.subr.mxu0 0.0
  %1545 = vmatpush1.msra.mxu0 0.0
  %1546 = vmatprep.subr.mxu0 0.0
  %1547 = vmatpush1.msra.mxu0 0.0
  %1548 = vmatprep.subr.mxu0 0.0
  %1549 = vmatpush1.msra.mxu0 0.0
  %1550 = vmatprep.subr.mxu0 0.0
  %1551 = vmatpush1.msra.mxu0 0.0
  %1552 = vmatprep.subr.mxu0 0.0
  %1553 = vmatpush1.msra.mxu0 0.0
  %1554 = vmatprep.subr.mxu0 0.0
  %1555 = vmatpush1.msra.mxu0 0.0
  %1556 = vmatprep.subr.mxu0 0.0
  %1557 = vmatpush1.msra.mxu0 0.0
  %1558 = vmatprep.subr.mxu0 0.0
  %1559 = vmatpush1.msra.mxu0 0.0
  %1560 = vmatprep.subr.mxu0 0.0
  %1561 = vmatpush1.msra.mxu0 0.0
  %1562 = vmatprep.subr.mxu0 0.0
  %1563 = vmatpush1.msra.mxu0 0.0
  %1564 = vmatprep.subr.mxu0 0.0
  %1565 = vmatpush1.msra.mxu0 0.0
  %1566 = vmatprep.subr.mxu0 0.0
  %1567 = vmatpush1.msra.mxu0 0.0
  %1568 = vmatprep.subr.mxu0 0.0
  %1569 = vmatpush1.msra.mxu0 0.0
  %1570 = vmatprep.subr.mxu0 0.0
  %1571 = vmatpush1.msra.mxu0 0.0
  %1572 = vmatprep.subr.mxu0 0.0
  %1573 = vmatpush1.msra.mxu0 0.0
  %1574 = vmatprep.subr.mxu0 0.0
  %1575 = vmatpush1.msra.mxu0 0.0
  %1576 = vmatprep.subr.mxu0 0.0
  %1577 = vmatpush1.msra.mxu0 0.0
  %1578 = vmatprep.subr.mxu0 0.0
  %1579 = vmatpush1.msra.mxu0 0.0
  %1580 = vmatprep.subr.mxu0 0.0
  %1581 = vmatpush1.msra.mxu0 0.0
  %1582 = vmatprep.subr.mxu0 0.0
  %1583 = vmatpush1.msra.mxu0 0.0
  %1584 = vmatprep.subr.mxu0 0.0
  %1585 = vmatpush1.msra.mxu0 0.0
  %1586 = vmatprep.subr.mxu0 0.0
  %1587 = vmatpush1.msra.mxu0 0.0
  %1588 = vmatprep.subr.mxu0 0.0
  %1589 = vmatpush1.msra.mxu0 0.0
  %1590 = vmatprep.subr.mxu0 0.0
  %1591 = vmatpush1.msra.mxu0 0.0
  %1592 = vmatprep.subr.mxu0 0.0
  %1593 = vmatpush1.msra.mxu0 0.0
  %1594 = vmatprep.subr.mxu0 0.0
  %1595 = vmatpush1.msra.mxu0 0.0
  %1596 = vmatprep.mubr.f32.mxu0 0.0
  %1597 = vmatmul.mubr.f32.gmra.mrb[0].mxu0 %v275
  %v1598 = vpop.f32.mrb[0].mxu0
  %v1599 = vadd.f32 %v1516, %v1598
  %v1600 = vpop.f32.mrb[0].mxu0
  %1601 = vmatprep.mubr.f32.mxu0 0.0
  %1602 = vmatmul.mubr.f32.gmra.mrb[0].mxu0 %v278
  %v1603 = vpop.f32.mrb[0].mxu0
  %v1604 = vadd.f32 %v1517, %v1603
  %v1605 = vpop.f32.mrb[0].mxu0
  %1606 = vmatprep.mubr.f32.mxu0 0.0
  %1607 = vmatmul.mubr.f32.gmra.mrb[0].mxu0 %v281
  %v1608 = vpop.f32.mrb[0].mxu0
  %v1609 = vadd.f32 %v1518, %v1608
  %v1610 = vpop.f32.mrb[0].mxu0
  %1611 = vmatprep.mubr.f32.mxu0 0.0
  %1612 = vmatmul.mubr.f32.gmra.mrb[0].mxu0 %v284
  %v1613 = vpop.f32.mrb[0].mxu0
  %v1614 = vadd.f32 %v1519, %v1613
  %v1615 = vpop.f32.mrb[0].mxu0
  %1616 = vmatprep.mubr.f32.mxu0 0.0
  %1617 = vmatmul.mubr.f32.gmra.mrb[0].mxu0 %v287
  %v1618 = vpop.f32.mrb[0].mxu0
  %v1619 = vadd.f32 %v1520, %v1618
  %v1620 = vpop.f32.mrb[0].mxu0
  %1621 = vmatprep.mubr.f32.mxu0 0.0
  %1622 = vmatmul.mubr.f32.gmra.mrb[0].mxu0 %v290
  %v1623 = vpop.f32.mrb[0].mxu0
  %v1624 = vadd.f32 %v1521, %v1623
  %v1625 = vpop.f32.mrb[0].mxu0
  %1626 = vmatprep.mubr.f32.mxu0 0.0
  %1627 = vmatmul.mubr.f32.gmra.mrb[0].mxu0 %v293
  %v1628 = vpop.f32.mrb[0].mxu0
  %v1629 = vadd.f32 %v1522, %v1628
  %v1630 = vpop.f32.mrb[0].mxu0
  %1631 = vmatprep.mubr.f32.mxu0 0.0
  %1632 = vmatmul.mubr.f32.gmra.mrb[0].mxu0 %v296
  %v1633 = vpop.f32.mrb[0].mxu0
  %v1634 = vadd.f32 %v1523, %v1633
  %v1635 = vpop.f32.mrb[0].mxu0
  %1636 = vmatprep.mubr.f32.mxu0 0.0
  %1637 = vmatmul.mubr.f32.gmra.mrb[0].mxu0 %v299
  %v1638 = vpop.f32.mrb[0].mxu0
  %v1639 = vadd.f32 %v1524, %v1638
  %v1640 = vpop.f32.mrb[0].mxu0
  %1641 = vmatprep.mubr.f32.mxu0 0.0
  %1642 = vmatmul.mubr.f32.gmra.mrb[0].mxu0 %v302
  %v1643 = vpop.f32.mrb[0].mxu0
  %v1644 = vadd.f32 %v1525, %v1643
  %v1645 = vpop.f32.mrb[0].mxu0
  %1646 = vmatprep.mubr.f32.mxu0 0.0
  %1647 = vmatmul.mubr.f32.gmra.mrb[0].mxu0 %v305
  %v1648 = vpop.f32.mrb[0].mxu0
  %v1649 = vadd.f32 %v1526, %v1648
  %v1650 = vpop.f32.mrb[0].mxu0
  %1651 = vmatprep.mubr.f32.mxu0 0.0
  %1652 = vmatmul.mubr.f32.gmra.mrb[0].mxu0 %v308
  %v1653 = vpop.f32.mrb[0].mxu0
  %v1654 = vadd.f32 %v1527, %v1653
  %v1655 = vpop.f32.mrb[0].mxu0
  %1656 = vmatprep.mubr.f32.mxu0 0.0
  %1657 = vmatmul.mubr.f32.gmra.mrb[0].mxu0 %v311
  %v1658 = vpop.f32.mrb[0].mxu0
  %v1659 = vadd.f32 %v1528, %v1658
  %v1660 = vpop.f32.mrb[0].mxu0
  %1661 = vmatprep.mubr.f32.mxu0 0.0
  %1662 = vmatmul.mubr.f32.gmra.mrb[0].mxu0 %v314
  %v1663 = vpop.f32.mrb[0].mxu0
  %v1664 = vadd.f32 %v1529, %v1663
  %v1665 = vpop.f32.mrb[0].mxu0
  %1666 = vmatprep.mubr.f32.mxu0 0.0
  %1667 = vmatmul.mubr.f32.gmra.mrb[0].mxu0 %v317
  %v1668 = vpop.f32.mrb[0].mxu0
  %v1669 = vadd.f32 %v1530, %v1668
  %v1670 = vpop.f32.mrb[0].mxu0
  %1671 = vmatprep.mubr.f32.mxu0 0.0
  %1672 = vmatmul.mubr.f32.gmra.mrb[0].mxu0 %v320
  %v1673 = vpop.f32.mrb[0].mxu0
  %v1674 = vadd.f32 %v1531, %v1673
  %v1675 = vpop.f32.mrb[0].mxu0
  %1676 = vdwg.mxu0
  %v1677 = vadd.f32 %v1599, %v167
  %v1678 = vadd.f32 %v1604, %v172
  %v1679 = vadd.f32 %v1609, %v177
  %v1680 = vadd.f32 %v1614, %v182
  %v1681 = vadd.f32 %v1619, %v187
  %v1682 = vadd.f32 %v1624, %v192
  %v1683 = vadd.f32 %v1629, %v197
  %v1684 = vadd.f32 %v1634, %v202
  %v1685 = vadd.f32 %v1639, %v207
  %v1686 = vadd.f32 %v1644, %v212
  %v1687 = vadd.f32 %v1649, %v217
  %v1688 = vadd.f32 %v1654, %v222
  %v1689 = vadd.f32 %v1659, %v227
  %v1690 = vadd.f32 %v1664, %v232
  %v1691 = vadd.f32 %v1669, %v237
  %v1692 = vadd.f32 %v1674, %v242
  %v1693 = vtanh.pop %v1677
  %v1694 = vtanh.pop %v1678
  %v1695 = vtanh.pop %v1679
  %v1696 = vtanh.pop %v1680
  %v1697 = vtanh.pop %v1681
  %v1698 = vtanh.pop %v1682
  %v1699 = vtanh.pop %v1683
  %v1700 = vtanh.pop %v1684
  %v1701 = vtanh.pop %v1685
  %v1702 = vtanh.pop %v1686
  %v1703 = vtanh.pop %v1687
  %v1704 = vtanh.pop %v1688
  %v1705 = vtanh.pop %v1689
  %v1706 = vtanh.pop %v1690
  %v1707 = vtanh.pop %v1691
  %v1708 = vtanh.pop %v1692
  %v1709 = vmul.f32 %v1693, 0.5
  %v1710 = vmul.f32 %v1694, 0.5
  %v1711 = vmul.f32 %v1695, 0.5
  %v1712 = vmul.f32 %v1696, 0.5
  %v1713 = vmul.f32 %v1697, 0.5
  %v1714 = vmul.f32 %v1698, 0.5
  %v1715 = vmul.f32 %v1699, 0.5
  %v1716 = vmul.f32 %v1700, 0.5
  %v1717 = vmul.f32 %v1701, 0.5
  %v1718 = vmul.f32 %v1702, 0.5
  %v1719 = vmul.f32 %v1703, 0.5
  %v1720 = vmul.f32 %v1704, 0.5
  %v1721 = vadd.f32 %v1709, 0.5
  %v1722 = vadd.f32 %v1710, 0.5
  %v1723 = vadd.f32 %v1711, 0.5
  %v1724 = vadd.f32 %v1712, 0.5
  %v1725 = vadd.f32 %v1713, 0.5
  %v1726 = vadd.f32 %v1714, 0.5
  %v1727 = vadd.f32 %v1715, 0.5
  %v1728 = vadd.f32 %v1716, 0.5
  %v1729 = vadd.f32 %v1717, 0.5
  %v1730 = vadd.f32 %v1718, 0.5
  %v1731 = vadd.f32 %v1719, 0.5
  %v1732 = vadd.f32 %v1720, 0.5
  %v1733 = vmul.f32 %v1725, %v1499
  %v1734 = vmul.f32 %v1726, %v1500
  %v1735 = vmul.f32 %v1727, %v1501
  %v1736 = vmul.f32 %v1728, %v1502
  %v1737 = vmul.f32 %v1721, %v1705
  %v1738 = vmul.f32 %v1722, %v1706
  %v1739 = vmul.f32 %v1723, %v1707
  %v1740 = vmul.f32 %v1724, %v1708
  %v1741 = vadd.f32 %v1733, %v1737
  %v1742 = vadd.f32 %v1734, %v1738
  %v1743 = vadd.f32 %v1735, %v1739
  %v1744 = vadd.f32 %v1736, %v1740
  %v1745 = vtanh.pop %v1741
  %v1746 = vtanh.pop %v1742
  %v1747 = vtanh.pop %v1743
  %v1748 = vtanh.pop %v1744
  %v1749 = vmul.f32 %v1729, %v1745
  %v1750 = vmul.f32 %v1730, %v1746
  %v1751 = vmul.f32 %v1731, %v1747
  %v1752 = vmul.f32 %v1732, %v1748
  %v1753 = vld [vmem:[%s0 + $0x6] sm:$0x1]
  %v1754 = vlaneseq
  %v1755 = vshrl.u32 %v1754, 7
  %v1756 = vsub.s32 0, %v1755
  %v1757 = vrot.slane %v1753, %v1756
  %v1758 = vmul.f32 %v1757, %v71
  %v1759 = vmul.f32 %v1757, %v76
  %v1760 = vmul.f32 %v1757, %v81
  %v1761 = vmul.f32 %v1757, %v86
  %v1762 = vmul.f32 %v1757, %v91
  %v1763 = vmul.f32 %v1757, %v96
  %v1764 = vmul.f32 %v1757, %v101
  %v1765 = vmul.f32 %v1757, %v106
  %v1766 = vmul.f32 %v1757, %v111
  %v1767 = vmul.f32 %v1757, %v116
  %v1768 = vmul.f32 %v1757, %v121
  %v1769 = vmul.f32 %v1757, %v126
  %v1770 = vmul.f32 %v1757, %v131
  %v1771 = vmul.f32 %v1757, %v136
  %v1772 = vmul.f32 %v1757, %v141
  %v1773 = vmul.f32 %v1757, %v146
  %1774 = vmatprep.subr.mxu0 0.0
  %1775 = vmatpush1.msra.mxu0 %v1749
  %1776 = vmatprep.subr.mxu0 0.0
  %1777 = vmatpush1.msra.mxu0 %v1750
  %1778 = vmatprep.subr.mxu0 0.0
  %1779 = vmatpush1.msra.mxu0 %v1751
  %1780 = vmatprep.subr.mxu0 0.0
  %1781 = vmatpush1.msra.mxu0 %v1752
  %1782 = vmatprep.subr.mxu0 0.0
  %1783 = vmatpush1.msra.mxu0 0.0
  %1784 = vmatprep.subr.mxu0 0.0
  %1785 = vmatpush1.msra.mxu0 0.0
  %1786 = vmatprep.subr.mxu0 0.0
  %1787 = vmatpush1.msra.mxu0 0.0
  %1788 = vmatprep.subr.mxu0 0.0
  %1789 = vmatpush1.msra.mxu0 0.0
  %1790 = vmatprep.subr.mxu0 0.0
  %1791 = vmatpush1.msra.mxu0 0.0
  %1792 = vmatprep.subr.mxu0 0.0
  %1793 = vmatpush1.msra.mxu0 0.0
  %1794 = vmatprep.subr.mxu0 0.0
  %1795 = vmatpush1.msra.mxu0 0.0
  %1796 = vmatprep.subr.mxu0 0.0
  %1797 = vmatpush1.msra.mxu0 0.0
  %1798 = vmatprep.subr.mxu0 0.0
  %1799 = vmatpush1.msra.mxu0 0.0
  %1800 = vmatprep.subr.mxu0 0.0
  %1801 = vmatpush1.msra.mxu0 0.0
  %1802 = vmatprep.subr.mxu0 0.0
  %1803 = vmatpush1.msra.mxu0 0.0
  %1804 = vmatprep.subr.mxu0 0.0
  %1805 = vmatpush1.msra.mxu0 0.0
  %1806 = vmatprep.subr.mxu0 0.0
  %1807 = vmatpush1.msra.mxu0 0.0
  %1808 = vmatprep.subr.mxu0 0.0
  %1809 = vmatpush1.msra.mxu0 0.0
  %1810 = vmatprep.subr.mxu0 0.0
  %1811 = vmatpush1.msra.mxu0 0.0
  %1812 = vmatprep.subr.mxu0 0.0
  %1813 = vmatpush1.msra.mxu0 0.0
  %1814 = vmatprep.subr.mxu0 0.0
  %1815 = vmatpush1.msra.mxu0 0.0
  %1816 = vmatprep.subr.mxu0 0.0
  %1817 = vmatpush1.msra.mxu0 0.0
  %1818 = vmatprep.subr.mxu0 0.0
  %1819 = vmatpush1.msra.mxu0 0.0
  %1820 = vmatprep.subr.mxu0 0.0
  %1821 = vmatpush1.msra.mxu0 0.0
  %1822 = vmatprep.subr.mxu0 0.0
  %1823 = vmatpush1.msra.mxu0 0.0
  %1824 = vmatprep.subr.mxu0 0.0
  %1825 = vmatpush1.msra.mxu0 0.0
  %1826 = vmatprep.subr.mxu0 0.0
  %1827 = vmatpush1.msra.mxu0 0.0
  %1828 = vmatprep.subr.mxu0 0.0
  %1829 = vmatpush1.msra.mxu0 0.0
  %1830 = vmatprep.subr.mxu0 0.0
  %1831 = vmatpush1.msra.mxu0 0.0
  %1832 = vmatprep.subr.mxu0 0.0
  %1833 = vmatpush1.msra.mxu0 0.0
  %1834 = vmatprep.subr.mxu0 0.0
  %1835 = vmatpush1.msra.mxu0 0.0
  %1836 = vmatprep.subr.mxu0 0.0
  %1837 = vmatpush1.msra.mxu0 0.0
  %1838 = vmatprep.mubr.f32.mxu0 0.0
  %1839 = vmatmul.mubr.f32.gmra.mrb[0].mxu0 %v275
  %v1840 = vpop.f32.mrb[0].mxu0
  %v1841 = vadd.f32 %v1758, %v1840
  %v1842 = vpop.f32.mrb[0].mxu0
  %1843 = vmatprep.mubr.f32.mxu0 0.0
  %1844 = vmatmul.mubr.f32.gmra.mrb[0].mxu0 %v278
  %v1845 = vpop.f32.mrb[0].mxu0
  %v1846 = vadd.f32 %v1759, %v1845
  %v1847 = vpop.f32.mrb[0].mxu0
  %1848 = vmatprep.mubr.f32.mxu0 0.0
  %1849 = vmatmul.mubr.f32.gmra.mrb[0].mxu0 %v281
  %v1850 = vpop.f32.mrb[0].mxu0
  %v1851 = vadd.f32 %v1760, %v1850
  %v1852 = vpop.f32.mrb[0].mxu0
  %1853 = vmatprep.mubr.f32.mxu0 0.0
  %1854 = vmatmul.mubr.f32.gmra.mrb[0].mxu0 %v284
  %v1855 = vpop.f32.mrb[0].mxu0
  %v1856 = vadd.f32 %v1761, %v1855
  %v1857 = vpop.f32.mrb[0].mxu0
  %1858 = vmatprep.mubr.f32.mxu0 0.0
  %1859 = vmatmul.mubr.f32.gmra.mrb[0].mxu0 %v287
  %v1860 = vpop.f32.mrb[0].mxu0
  %v1861 = vadd.f32 %v1762, %v1860
  %v1862 = vpop.f32.mrb[0].mxu0
  %1863 = vmatprep.mubr.f32.mxu0 0.0
  %1864 = vmatmul.mubr.f32.gmra.mrb[0].mxu0 %v290
  %v1865 = vpop.f32.mrb[0].mxu0
  %v1866 = vadd.f32 %v1763, %v1865
  %v1867 = vpop.f32.mrb[0].mxu0
  %1868 = vmatprep.mubr.f32.mxu0 0.0
  %1869 = vmatmul.mubr.f32.gmra.mrb[0].mxu0 %v293
  %v1870 = vpop.f32.mrb[0].mxu0
  %v1871 = vadd.f32 %v1764, %v1870
  %v1872 = vpop.f32.mrb[0].mxu0
  %1873 = vmatprep.mubr.f32.mxu0 0.0
  %1874 = vmatmul.mubr.f32.gmra.mrb[0].mxu0 %v296
  %v1875 = vpop.f32.mrb[0].mxu0
  %v1876 = vadd.f32 %v1765, %v1875
  %v1877 = vpop.f32.mrb[0].mxu0
  %1878 = vmatprep.mubr.f32.mxu0 0.0
  %1879 = vmatmul.mubr.f32.gmra.mrb[0].mxu0 %v299
  %v1880 = vpop.f32.mrb[0].mxu0
  %v1881 = vadd.f32 %v1766, %v1880
  %v1882 = vpop.f32.mrb[0].mxu0
  %1883 = vmatprep.mubr.f32.mxu0 0.0
  %1884 = vmatmul.mubr.f32.gmra.mrb[0].mxu0 %v302
  %v1885 = vpop.f32.mrb[0].mxu0
  %v1886 = vadd.f32 %v1767, %v1885
  %v1887 = vpop.f32.mrb[0].mxu0
  %1888 = vmatprep.mubr.f32.mxu0 0.0
  %1889 = vmatmul.mubr.f32.gmra.mrb[0].mxu0 %v305
  %v1890 = vpop.f32.mrb[0].mxu0
  %v1891 = vadd.f32 %v1768, %v1890
  %v1892 = vpop.f32.mrb[0].mxu0
  %1893 = vmatprep.mubr.f32.mxu0 0.0
  %1894 = vmatmul.mubr.f32.gmra.mrb[0].mxu0 %v308
  %v1895 = vpop.f32.mrb[0].mxu0
  %v1896 = vadd.f32 %v1769, %v1895
  %v1897 = vpop.f32.mrb[0].mxu0
  %1898 = vmatprep.mubr.f32.mxu0 0.0
  %1899 = vmatmul.mubr.f32.gmra.mrb[0].mxu0 %v311
  %v1900 = vpop.f32.mrb[0].mxu0
  %v1901 = vadd.f32 %v1770, %v1900
  %v1902 = vpop.f32.mrb[0].mxu0
  %1903 = vmatprep.mubr.f32.mxu0 0.0
  %1904 = vmatmul.mubr.f32.gmra.mrb[0].mxu0 %v314
  %v1905 = vpop.f32.mrb[0].mxu0
  %v1906 = vadd.f32 %v1771, %v1905
  %v1907 = vpop.f32.mrb[0].mxu0
  %1908 = vmatprep.mubr.f32.mxu0 0.0
  %1909 = vmatmul.mubr.f32.gmra.mrb[0].mxu0 %v317
  %v1910 = vpop.f32.mrb[0].mxu0
  %v1911 = vadd.f32 %v1772, %v1910
  %v1912 = vpop.f32.mrb[0].mxu0
  %1913 = vmatprep.mubr.f32.mxu0 0.0
  %1914 = vmatmul.mubr.f32.gmra.mrb[0].mxu0 %v320
  %v1915 = vpop.f32.mrb[0].mxu0
  %v1916 = vadd.f32 %v1773, %v1915
  %v1917 = vpop.f32.mrb[0].mxu0
  %1918 = vdwg.mxu0
  %v1919 = vadd.f32 %v1841, %v167
  %v1920 = vadd.f32 %v1846, %v172
  %v1921 = vadd.f32 %v1851, %v177
  %v1922 = vadd.f32 %v1856, %v182
  %v1923 = vadd.f32 %v1861, %v187
  %v1924 = vadd.f32 %v1866, %v192
  %v1925 = vadd.f32 %v1871, %v197
  %v1926 = vadd.f32 %v1876, %v202
  %v1927 = vadd.f32 %v1881, %v207
  %v1928 = vadd.f32 %v1886, %v212
  %v1929 = vadd.f32 %v1891, %v217
  %v1930 = vadd.f32 %v1896, %v222
  %v1931 = vadd.f32 %v1901, %v227
  %v1932 = vadd.f32 %v1906, %v232
  %v1933 = vadd.f32 %v1911, %v237
  %v1934 = vadd.f32 %v1916, %v242
  %v1935 = vtanh.pop %v1919
  %v1936 = vtanh.pop %v1920
  %v1937 = vtanh.pop %v1921
  %v1938 = vtanh.pop %v1922
  %v1939 = vtanh.pop %v1923
  %v1940 = vtanh.pop %v1924
  %v1941 = vtanh.pop %v1925
  %v1942 = vtanh.pop %v1926
  %v1943 = vtanh.pop %v1927
  %v1944 = vtanh.pop %v1928
  %v1945 = vtanh.pop %v1929
  %v1946 = vtanh.pop %v1930
  %v1947 = vtanh.pop %v1931
  %v1948 = vtanh.pop %v1932
  %v1949 = vtanh.pop %v1933
  %v1950 = vtanh.pop %v1934
  %v1951 = vmul.f32 %v1935, 0.5
  %v1952 = vmul.f32 %v1936, 0.5
  %v1953 = vmul.f32 %v1937, 0.5
  %v1954 = vmul.f32 %v1938, 0.5
  %v1955 = vmul.f32 %v1939, 0.5
  %v1956 = vmul.f32 %v1940, 0.5
  %v1957 = vmul.f32 %v1941, 0.5
  %v1958 = vmul.f32 %v1942, 0.5
  %v1959 = vmul.f32 %v1943, 0.5
  %v1960 = vmul.f32 %v1944, 0.5
  %v1961 = vmul.f32 %v1945, 0.5
  %v1962 = vmul.f32 %v1946, 0.5
  %v1963 = vadd.f32 %v1951, 0.5
  %v1964 = vadd.f32 %v1952, 0.5
  %v1965 = vadd.f32 %v1953, 0.5
  %v1966 = vadd.f32 %v1954, 0.5
  %v1967 = vadd.f32 %v1955, 0.5
  %v1968 = vadd.f32 %v1956, 0.5
  %v1969 = vadd.f32 %v1957, 0.5
  %v1970 = vadd.f32 %v1958, 0.5
  %v1971 = vadd.f32 %v1959, 0.5
  %v1972 = vadd.f32 %v1960, 0.5
  %v1973 = vadd.f32 %v1961, 0.5
  %v1974 = vadd.f32 %v1962, 0.5
  %v1975 = vmul.f32 %v1967, %v1741
  %v1976 = vmul.f32 %v1968, %v1742
  %v1977 = vmul.f32 %v1969, %v1743
  %v1978 = vmul.f32 %v1970, %v1744
  %v1979 = vmul.f32 %v1963, %v1947
  %v1980 = vmul.f32 %v1964, %v1948
  %v1981 = vmul.f32 %v1965, %v1949
  %v1982 = vmul.f32 %v1966, %v1950
  %v1983 = vadd.f32 %v1975, %v1979
  %v1984 = vadd.f32 %v1976, %v1980
  %v1985 = vadd.f32 %v1977, %v1981
  %v1986 = vadd.f32 %v1978, %v1982
  %v1987 = vtanh.pop %v1983
  %v1988 = vtanh.pop %v1984
  %v1989 = vtanh.pop %v1985
  %v1990 = vtanh.pop %v1986
  %v1991 = vmul.f32 %v1971, %v1987
  %v1992 = vmul.f32 %v1972, %v1988
  %v1993 = vmul.f32 %v1973, %v1989
  %v1994 = vmul.f32 %v1974, %v1990
  %v1995 = vld [vmem:[%s0 + $0x7] sm:$0x1]
  %v1996 = vlaneseq
  %v1997 = vshrl.u32 %v1996, 7
  %v1998 = vsub.s32 0, %v1997
  %v1999 = vrot.slane %v1995, %v1998
  %v2000 = vmul.f32 %v1999, %v71
  %v2001 = vmul.f32 %v1999, %v76
  %v2002 = vmul.f32 %v1999, %v81
  %v2003 = vmul.f32 %v1999, %v86
  %v2004 = vmul.f32 %v1999, %v91
  %v2005 = vmul.f32 %v1999, %v96
  %v2006 = vmul.f32 %v1999, %v101
  %v2007 = vmul.f32 %v1999, %v106
  %v2008 = vmul.f32 %v1999, %v111
  %v2009 = vmul.f32 %v1999, %v116
  %v2010 = vmul.f32 %v1999, %v121
  %v2011 = vmul.f32 %v1999, %v126
  %v2012 = vmul.f32 %v1999, %v131
  %v2013 = vmul.f32 %v1999, %v136
  %v2014 = vmul.f32 %v1999, %v141
  %v2015 = vmul.f32 %v1999, %v146
  %2016 = vmatprep.subr.mxu0 0.0
  %2017 = vmatpush1.msra.mxu0 %v1991
  %2018 = vmatprep.subr.mxu0 0.0
  %2019 = vmatpush1.msra.mxu0 %v1992
  %2020 = vmatprep.subr.mxu0 0.0
  %2021 = vmatpush1.msra.mxu0 %v1993
  %2022 = vmatprep.subr.mxu0 0.0
  %2023 = vmatpush1.msra.mxu0 %v1994
  %2024 = vmatprep.subr.mxu0 0.0
  %2025 = vmatpush1.msra.mxu0 0.0
  %2026 = vmatprep.subr.mxu0 0.0
  %2027 = vmatpush1.msra.mxu0 0.0
  %2028 = vmatprep.subr.mxu0 0.0
  %2029 = vmatpush1.msra.mxu0 0.0
  %2030 = vmatprep.subr.mxu0 0.0
  %2031 = vmatpush1.msra.mxu0 0.0
  %2032 = vmatprep.subr.mxu0 0.0
  %2033 = vmatpush1.msra.mxu0 0.0
  %2034 = vmatprep.subr.mxu0 0.0
  %2035 = vmatpush1.msra.mxu0 0.0
  %2036 = vmatprep.subr.mxu0 0.0
  %2037 = vmatpush1.msra.mxu0 0.0
  %2038 = vmatprep.subr.mxu0 0.0
  %2039 = vmatpush1.msra.mxu0 0.0
  %2040 = vmatprep.subr.mxu0 0.0
  %2041 = vmatpush1.msra.mxu0 0.0
  %2042 = vmatprep.subr.mxu0 0.0
  %2043 = vmatpush1.msra.mxu0 0.0
  %2044 = vmatprep.subr.mxu0 0.0
  %2045 = vmatpush1.msra.mxu0 0.0
  %2046 = vmatprep.subr.mxu0 0.0
  %2047 = vmatpush1.msra.mxu0 0.0
  %2048 = vmatprep.subr.mxu0 0.0
  %2049 = vmatpush1.msra.mxu0 0.0
  %2050 = vmatprep.subr.mxu0 0.0
  %2051 = vmatpush1.msra.mxu0 0.0
  %2052 = vmatprep.subr.mxu0 0.0
  %2053 = vmatpush1.msra.mxu0 0.0
  %2054 = vmatprep.subr.mxu0 0.0
  %2055 = vmatpush1.msra.mxu0 0.0
  %2056 = vmatprep.subr.mxu0 0.0
  %2057 = vmatpush1.msra.mxu0 0.0
  %2058 = vmatprep.subr.mxu0 0.0
  %2059 = vmatpush1.msra.mxu0 0.0
  %2060 = vmatprep.subr.mxu0 0.0
  %2061 = vmatpush1.msra.mxu0 0.0
  %2062 = vmatprep.subr.mxu0 0.0
  %2063 = vmatpush1.msra.mxu0 0.0
  %2064 = vmatprep.subr.mxu0 0.0
  %2065 = vmatpush1.msra.mxu0 0.0
  %2066 = vmatprep.subr.mxu0 0.0
  %2067 = vmatpush1.msra.mxu0 0.0
  %2068 = vmatprep.subr.mxu0 0.0
  %2069 = vmatpush1.msra.mxu0 0.0
  %2070 = vmatprep.subr.mxu0 0.0
  %2071 = vmatpush1.msra.mxu0 0.0
  %2072 = vmatprep.subr.mxu0 0.0
  %2073 = vmatpush1.msra.mxu0 0.0
  %2074 = vmatprep.subr.mxu0 0.0
  %2075 = vmatpush1.msra.mxu0 0.0
  %2076 = vmatprep.subr.mxu0 0.0
  %2077 = vmatpush1.msra.mxu0 0.0
  %2078 = vmatprep.subr.mxu0 0.0
  %2079 = vmatpush1.msra.mxu0 0.0
  %2080 = vmatprep.mubr.f32.mxu0 0.0
  %2081 = vmatmul.mubr.f32.gmra.mrb[0].mxu0 %v275
  %v2082 = vpop.f32.mrb[0].mxu0
  %v2083 = vadd.f32 %v2000, %v2082
  %v2084 = vpop.f32.mrb[0].mxu0
  %2085 = vmatprep.mubr.f32.mxu0 0.0
  %2086 = vmatmul.mubr.f32.gmra.mrb[0].mxu0 %v278
  %v2087 = vpop.f32.mrb[0].mxu0
  %v2088 = vadd.f32 %v2001, %v2087
  %v2089 = vpop.f32.mrb[0].mxu0
  %2090 = vmatprep.mubr.f32.mxu0 0.0
  %2091 = vmatmul.mubr.f32.gmra.mrb[0].mxu0 %v281
  %v2092 = vpop.f32.mrb[0].mxu0
  %v2093 = vadd.f32 %v2002, %v2092
  %v2094 = vpop.f32.mrb[0].mxu0
  %2095 = vmatprep.mubr.f32.mxu0 0.0
  %2096 = vmatmul.mubr.f32.gmra.mrb[0].mxu0 %v284
  %v2097 = vpop.f32.mrb[0].mxu0
  %v2098 = vadd.f32 %v2003, %v2097
  %v2099 = vpop.f32.mrb[0].mxu0
  %2100 = vmatprep.mubr.f32.mxu0 0.0
  %2101 = vmatmul.mubr.f32.gmra.mrb[0].mxu0 %v287
  %v2102 = vpop.f32.mrb[0].mxu0
  %v2103 = vadd.f32 %v2004, %v2102
  %v2104 = vpop.f32.mrb[0].mxu0
  %2105 = vmatprep.mubr.f32.mxu0 0.0
  %2106 = vmatmul.mubr.f32.gmra.mrb[0].mxu0 %v290
  %v2107 = vpop.f32.mrb[0].mxu0
  %v2108 = vadd.f32 %v2005, %v2107
  %v2109 = vpop.f32.mrb[0].mxu0
  %2110 = vmatprep.mubr.f32.mxu0 0.0
  %2111 = vmatmul.mubr.f32.gmra.mrb[0].mxu0 %v293
  %v2112 = vpop.f32.mrb[0].mxu0
  %v2113 = vadd.f32 %v2006, %v2112
  %v2114 = vpop.f32.mrb[0].mxu0
  %2115 = vmatprep.mubr.f32.mxu0 0.0
  %2116 = vmatmul.mubr.f32.gmra.mrb[0].mxu0 %v296
  %v2117 = vpop.f32.mrb[0].mxu0
  %v2118 = vadd.f32 %v2007, %v2117
  %v2119 = vpop.f32.mrb[0].mxu0
  %2120 = vmatprep.mubr.f32.mxu0 0.0
  %2121 = vmatmul.mubr.f32.gmra.mrb[0].mxu0 %v299
  %v2122 = vpop.f32.mrb[0].mxu0
  %v2123 = vadd.f32 %v2008, %v2122
  %v2124 = vpop.f32.mrb[0].mxu0
  %2125 = vmatprep.mubr.f32.mxu0 0.0
  %2126 = vmatmul.mubr.f32.gmra.mrb[0].mxu0 %v302
  %v2127 = vpop.f32.mrb[0].mxu0
  %v2128 = vadd.f32 %v2009, %v2127
  %v2129 = vpop.f32.mrb[0].mxu0
  %2130 = vmatprep.mubr.f32.mxu0 0.0
  %2131 = vmatmul.mubr.f32.gmra.mrb[0].mxu0 %v305
  %v2132 = vpop.f32.mrb[0].mxu0
  %v2133 = vadd.f32 %v2010, %v2132
  %v2134 = vpop.f32.mrb[0].mxu0
  %2135 = vmatprep.mubr.f32.mxu0 0.0
  %2136 = vmatmul.mubr.f32.gmra.mrb[0].mxu0 %v308
  %v2137 = vpop.f32.mrb[0].mxu0
  %v2138 = vadd.f32 %v2011, %v2137
  %v2139 = vpop.f32.mrb[0].mxu0
  %2140 = vmatprep.mubr.f32.mxu0 0.0
  %2141 = vmatmul.mubr.f32.gmra.mrb[0].mxu0 %v311
  %v2142 = vpop.f32.mrb[0].mxu0
  %v2143 = vadd.f32 %v2012, %v2142
  %v2144 = vpop.f32.mrb[0].mxu0
  %2145 = vmatprep.mubr.f32.mxu0 0.0
  %2146 = vmatmul.mubr.f32.gmra.mrb[0].mxu0 %v314
  %v2147 = vpop.f32.mrb[0].mxu0
  %v2148 = vadd.f32 %v2013, %v2147
  %v2149 = vpop.f32.mrb[0].mxu0
  %2150 = vmatprep.mubr.f32.mxu0 0.0
  %2151 = vmatmul.mubr.f32.gmra.mrb[0].mxu0 %v317
  %v2152 = vpop.f32.mrb[0].mxu0
  %v2153 = vadd.f32 %v2014, %v2152
  %v2154 = vpop.f32.mrb[0].mxu0
  %2155 = vmatprep.mubr.f32.mxu0 0.0
  %2156 = vmatmul.mubr.f32.gmra.mrb[0].mxu0 %v320
  %v2157 = vpop.f32.mrb[0].mxu0
  %v2158 = vadd.f32 %v2015, %v2157
  %v2159 = vpop.f32.mrb[0].mxu0
  %2160 = vdwg.mxu0
  %v2161 = vadd.f32 %v2083, %v167
  %v2162 = vadd.f32 %v2088, %v172
  %v2163 = vadd.f32 %v2093, %v177
  %v2164 = vadd.f32 %v2098, %v182
  %v2165 = vadd.f32 %v2103, %v187
  %v2166 = vadd.f32 %v2108, %v192
  %v2167 = vadd.f32 %v2113, %v197
  %v2168 = vadd.f32 %v2118, %v202
  %v2169 = vadd.f32 %v2123, %v207
  %v2170 = vadd.f32 %v2128, %v212
  %v2171 = vadd.f32 %v2133, %v217
  %v2172 = vadd.f32 %v2138, %v222
  %v2173 = vadd.f32 %v2143, %v227
  %v2174 = vadd.f32 %v2148, %v232
  %v2175 = vadd.f32 %v2153, %v237
  %v2176 = vadd.f32 %v2158, %v242
  %v2177 = vtanh.pop %v2161
  %v2178 = vtanh.pop %v2162
  %v2179 = vtanh.pop %v2163
  %v2180 = vtanh.pop %v2164
  %v2181 = vtanh.pop %v2165
  %v2182 = vtanh.pop %v2166
  %v2183 = vtanh.pop %v2167
  %v2184 = vtanh.pop %v2168
  %v2185 = vtanh.pop %v2169
  %v2186 = vtanh.pop %v2170
  %v2187 = vtanh.pop %v2171
  %v2188 = vtanh.pop %v2172
  %v2189 = vtanh.pop %v2173
  %v2190 = vtanh.pop %v2174
  %v2191 = vtanh.pop %v2175
  %v2192 = vtanh.pop %v2176
  %v2193 = vmul.f32 %v2177, 0.5
  %v2194 = vmul.f32 %v2178, 0.5
  %v2195 = vmul.f32 %v2179, 0.5
  %v2196 = vmul.f32 %v2180, 0.5
  %v2197 = vmul.f32 %v2181, 0.5
  %v2198 = vmul.f32 %v2182, 0.5
  %v2199 = vmul.f32 %v2183, 0.5
  %v2200 = vmul.f32 %v2184, 0.5
  %v2201 = vmul.f32 %v2185, 0.5
  %v2202 = vmul.f32 %v2186, 0.5
  %v2203 = vmul.f32 %v2187, 0.5
  %v2204 = vmul.f32 %v2188, 0.5
  %v2205 = vadd.f32 %v2193, 0.5
  %v2206 = vadd.f32 %v2194, 0.5
  %v2207 = vadd.f32 %v2195, 0.5
  %v2208 = vadd.f32 %v2196, 0.5
  %v2209 = vadd.f32 %v2197, 0.5
  %v2210 = vadd.f32 %v2198, 0.5
  %v2211 = vadd.f32 %v2199, 0.5
  %v2212 = vadd.f32 %v2200, 0.5
  %v2213 = vadd.f32 %v2201, 0.5
  %v2214 = vadd.f32 %v2202, 0.5
  %v2215 = vadd.f32 %v2203, 0.5
  %v2216 = vadd.f32 %v2204, 0.5
  %v2217 = vmul.f32 %v2209, %v1983
  %v2218 = vmul.f32 %v2210, %v1984
  %v2219 = vmul.f32 %v2211, %v1985
  %v2220 = vmul.f32 %v2212, %v1986
  %v2221 = vmul.f32 %v2205, %v2189
  %v2222 = vmul.f32 %v2206, %v2190
  %v2223 = vmul.f32 %v2207, %v2191
  %v2224 = vmul.f32 %v2208, %v2192
  %v2225 = vadd.f32 %v2217, %v2221
  %v2226 = vadd.f32 %v2218, %v2222
  %v2227 = vadd.f32 %v2219, %v2223
  %v2228 = vadd.f32 %v2220, %v2224
  %v2229 = vtanh.pop %v2225
  %v2230 = vtanh.pop %v2226
  %v2231 = vtanh.pop %v2227
  %v2232 = vtanh.pop %v2228
  %v2233 = vmul.f32 %v2213, %v2229
  %v2234 = vmul.f32 %v2214, %v2230
  %v2235 = vmul.f32 %v2215, %v2231
  %v2236 = vmul.f32 %v2216, %v2232
  %vm2237 = vcmask 31744
  %2238 = vst.msk [vmem:[#allocation2] sm:$0xff] %vm2237, %v2233
  %2239 = vst.msk [vmem:[#allocation2 + $0x8] sm:$0xff] %vm2237, %v2234
  %2240 = vst.msk [vmem:[#allocation2 + $0x10] sm:$0xff] %vm2237, %v2235
  %2241 = vst.msk [vmem:[#allocation2 + $0x18] sm:$0xff] %vm2237, %v2236
  %2242 = vst.msk [vmem:[#allocation3] sm:$0xff] %vm2237, %v2225
  %2243 = vst.msk [vmem:[#allocation3 + $0x8] sm:$0xff] %vm2237, %v2226
  %2244 = vst.msk [vmem:[#allocation3 + $0x10] sm:$0xff] %vm2237, %v2227
  %2245 = vst.msk [vmem:[#allocation3 + $0x18] sm:$0xff] %vm2237, %v2228
  // Predicated region
  $region30: #{rnn_forward.1} parent=0 // pred_check
    %p2246 = pneg %p23
  $region31: #{rnn_forward.1} parent=0 // pred_check_branch
    %2248 = sbr.rel (%p2246) target = $region33
  $region32: #{rnn_forward.1} parent=0 // pred_region
    %v2249 = vld [vmem:[%s4] sm:$0x1f]
    %v2250 = vld [vmem:[#allocation2] sm:$0xff]
    %v2251 = vld [vmem:[#allocation2 + $0x8] sm:$0xff]
    %v2252 = vld [vmem:[#allocation2 + $0x10] sm:$0xff]
    %v2253 = vld [vmem:[#allocation2 + $0x18] sm:$0xff]
    %v2254 = vld [vmem:[%s5] sm:$0x1f]
    %2256 = vset.pattern.permute.xlu0 0
    %2257 = vperm.xlu0 %2256, %v2254
    %v2258 = vpop.permute.xlu0 %2257
    %v2261 = vsel %vm273, %v2249, 0
    %2263 = vmatprep.subr.mxu0 0.0
    %2264 = vmatpush1.msra.mxu0 %v2250
    %2265 = vmatprep.subr.mxu0 0.0
    %2266 = vmatpush1.msra.mxu0 %v2251
    %2267 = vmatprep.subr.mxu0 0.0
    %2268 = vmatpush1.msra.mxu0 %v2252
    %2269 = vmatprep.subr.mxu0 0.0
    %2270 = vmatpush1.msra.mxu0 %v2253
    %2271 = vmatprep.subr.mxu0 0.0
    %2272 = vmatpush1.msra.mxu0 0.0
    %2273 = vmatprep.subr.mxu0 0.0
    %2274 = vmatpush1.msra.mxu0 0.0
    %2275 = vmatprep.subr.mxu0 0.0
    %2276 = vmatpush1.msra.mxu0 0.0
    %2277 = vmatprep.subr.mxu0 0.0
    %2278 = vmatpush1.msra.mxu0 0.0
    %2279 = vmatprep.subr.mxu0 0.0
    %2280 = vmatpush1.msra.mxu0 0.0
    %2281 = vmatprep.subr.mxu0 0.0
    %2282 = vmatpush1.msra.mxu0 0.0
    %2283 = vmatprep.subr.mxu0 0.0
    %2284 = vmatpush1.msra.mxu0 0.0
    %2285 = vmatprep.subr.mxu0 0.0
    %2286 = vmatpush1.msra.mxu0 0.0
    %2287 = vmatprep.subr.mxu0 0.0
    %2288 = vmatpush1.msra.mxu0 0.0
    %2289 = vmatprep.subr.mxu0 0.0
    %2290 = vmatpush1.msra.mxu0 0.0
    %2291 = vmatprep.subr.mxu0 0.0
    %2292 = vmatpush1.msra.mxu0 0.0
    %2293 = vmatprep.subr.mxu0 0.0
    %2294 = vmatpush1.msra.mxu0 0.0
    %2295 = vmatprep.subr.mxu0 0.0
    %2296 = vmatpush1.msra.mxu0 0.0
    %2297 = vmatprep.subr.mxu0 0.0
    %2298 = vmatpush1.msra.mxu0 0.0
    %2299 = vmatprep.subr.mxu0 0.0
    %2300 = vmatpush1.msra.mxu0 0.0
    %2301 = vmatprep.subr.mxu0 0.0
    %2302 = vmatpush1.msra.mxu0 0.0
    %2303 = vmatprep.subr.mxu0 0.0
    %2304 = vmatpush1.msra.mxu0 0.0
    %2305 = vmatprep.subr.mxu0 0.0
    %2306 = vmatpush1.msra.mxu0 0.0
    %2307 = vmatprep.subr.mxu0 0.0
    %2308 = vmatpush1.msra.mxu0 0.0
    %2309 = vmatprep.subr.mxu0 0.0
    %2310 = vmatpush1.msra.mxu0 0.0
    %2311 = vmatprep.subr.mxu0 0.0
    %2312 = vmatpush1.msra.mxu0 0.0
    %2313 = vmatprep.subr.mxu0 0.0
    %2314 = vmatpush1.msra.mxu0 0.0
    %2315 = vmatprep.subr.mxu0 0.0
    %2316 = vmatpush1.msra.mxu0 0.0
    %2317 = vmatprep.subr.mxu0 0.0
    %2318 = vmatpush1.msra.mxu0 0.0
    %2319 = vmatprep.subr.mxu0 0.0
    %2320 = vmatpush1.msra.mxu0 0.0
    %2321 = vmatprep.subr.mxu0 0.0
    %2322 = vmatpush1.msra.mxu0 0.0
    %2323 = vmatprep.subr.mxu0 0.0
    %2324 = vmatpush1.msra.mxu0 0.0
    %2325 = vmatprep.subr.mxu0 0.0
    %2326 = vmatpush1.msra.mxu0 0.0
    %2327 = vmatprep.mubr.f32.mxu0 0.0
    %2328 = vmatmul.mubr.f32.gmra.mrb[0].mxu0 %v2261
    %v2329 = vpop.f32.mrb[0].mxu0
    %v2330 = vadd.f32 %v2258, %v2329
    %v2331 = vpop.f32.mrb[0].mxu0
    %2332 = vdwg.mxu0
    %vm2333 = vcmask 28672
    %2334 = vst.msk [vmem:[%s6] sm:$0x1f] %vm2333, %v2330
  $region33: #{rnn_forward.1} parent=0 // pred_fallthru
    _
  // Predicated region
  $region34: #{rnn_forward.1} parent=0 // pred_check
    _
  $region35: #{rnn_forward.1} parent=0 // pred_check_branch
    %2336 = sbr.rel (0) target = $region37
  $region36: #{rnn_forward.1} parent=0 // pred_region
    _
  $region37: #{rnn_forward.1} parent=0 // pred_fallthru
    _
  // Predicated region
  $region38: #{rnn_forward.1} parent=0 // pred_check
    _
  $region39: #{rnn_forward.1} parent=0 // pred_check_branch
    %2338 = sbr.rel (0) target = $region41
  $region40: #{rnn_forward.1} parent=0 // pred_region
    _
  $region41: #{rnn_forward.1} parent=0 // pred_fallthru
    _

</llo_original>
